<compile_context>
chip_gen: v5e
topology: v5e:2x2
jax: 0.10.0
libtpu: 0.0.40
codegen_flags: <defaults>
</compile_context>

<pallas_src>
import functools

import jax
import jax.numpy as jnp
import numpy as np
from jax.experimental import pallas as pl
from jax.experimental.pallas import tpu as pltpu


def _round_up(n: int, m: int) -> int:
    return ((n + m - 1) // m) * m


def _sed_kernel(x_ref, sw_ref, sb_ref, cw_ref, cb_ref, o_ref, acc_ref, *, out_scale):
    """One (batch element, W-tile) grid step of the fused SedCNN forward.

    Shapes (Fp = F padded to 128, Cp = num_classes padded to 128):
      x_ref  : [Cin, H, tw, 1]   NCHW input tile (trailing unit lane dim)
      sw_ref : [Cin, 1, 1, Fp]   1x1-conv stem weight, zero padded
      sb_ref : [1, 1, Fp]        stem bias
      cw_ref : [Fp, Cp]          classifier weight (== torch clf.weight.T), padded
      cb_ref : [1, Cp]           classifier bias, padded
      o_ref  : [1, 1, Cp]        logits for this batch element
      acc_ref: [H, Fp] f32       running sum over W of relu(stem(x))
      out_scale = 1 / (W * H)    both mean scales folded into one epilogue scalar
    """
    wt = pl.program_id(1)

    @pl.when(wt == 0)
    def _init():
        acc_ref[...] = jnp.zeros_like(acc_ref)

    cin = x_ref.shape[0]
    h_sz, fp = acc_ref.shape

    # --- 1x1-conv + ReLU stem on the VPU -----------------------------------
    # K = Cin is far too shallow for the MXU, so do Cin broadcast FMAs:
    # [H, tw, 1] * [1, 1, Fp] -> [H, tw, Fp].
    feat = x_ref[0] * sw_ref[0]
    for c in range(1, cin):
        feat = feat + x_ref[c] * sw_ref[c]
    feat = jnp.maximum(feat + sb_ref[...], 0.0)               # [H, tw, Fp]

    # --- fused mean-over-W: accumulate this W tile's partial sum -----------
    # (the 1/W scale is folded into out_scale in the epilogue)
    acc_ref[...] += jnp.sum(feat, axis=1)                      # [H, Fp]

    # --- epilogue on the last W tile: H pooling + classifier ---------------
    @pl.when(wt == pl.num_programs(1) - 1)
    def _epilogue():
        s = acc_ref[...]                                       # sum over W, [H, Fp]

        # Neighbour shifts along H via 0/1 shift matrices; rows 0 / H-1 come
        # out zero-padded (exactly avg_pool1d with count_include_pad=True) and
        # are masked to -inf for max_pool1d.  MXU is otherwise idle here.
        ri = jax.lax.broadcasted_iota(jnp.int32, (h_sz, h_sz), 0)
        ci = jax.lax.broadcasted_iota(jnp.int32, (h_sz, h_sz), 1)
        s_prev = (ri == ci + 1).astype(jnp.float32)            # prev[i] = s[i-1]
        s_next = (ri + 1 == ci).astype(jnp.float32)            # next[i] = s[i+1]
        prev = jnp.dot(s_prev, s, preferred_element_type=jnp.float32)
        nxt = jnp.dot(s_next, s, preferred_element_type=jnp.float32)

        row = jax.lax.broadcasted_iota(jnp.int32, (h_sz, fp), 0)
        prev_mx = jnp.where(row == 0, -jnp.inf, prev)
        next_mx = jnp.where(row == h_sz - 1, -jnp.inf, nxt)
        # max/avg pooling commute with the positive 1/W scale, so pool the raw
        # W-sum and apply out_scale = 1/(W*H) once at the end.
        x1 = jnp.maximum(jnp.maximum(prev_mx, s), next_mx)     # ∝ max_pool1d(3,1,1)
        x2 = (prev + s + nxt) * (1.0 / 3.0)                    # ∝ avg_pool1d(3,1,1)

        hvec = jnp.sum(x1 + x2, axis=0, keepdims=True) * out_scale    # [1, Fp]
        # nn.Dropout: identity in eval mode.
        logits = jnp.dot(hvec, cw_ref[...], preferred_element_type=jnp.float32)
        o_ref[0] = logits + cb_ref[...]


@jax.jit
def sed_cnn_forward(x, stem_w, stem_b, clf_w, clf_b):
    """SedCNN forward.  x: [B, Cin, H, W] (NCHW).  Returns logits [B, num_classes]."""
    B, Cin, H, W = x.shape
    F = stem_w.shape[1]
    C = clf_w.shape[1]
    Fp = _round_up(F, 128)    # lane-dense feature width
    Cp = _round_up(C, 128)    # lane-dense class width
    f32 = jnp.float32

    # Zero-pad weights to lane-dense widths (numerically exact: padded rows/cols
    # contribute nothing, padding sliced off at the end).
    sw = jnp.zeros((Cin, 1, 1, Fp), f32).at[:, 0, 0, :F].set(stem_w.astype(f32))
    sb = jnp.zeros((1, 1, Fp), f32).at[0, 0, :F].set(stem_b.astype(f32).reshape(F))
    cw = jnp.zeros((Fp, Cp), f32).at[:F, :C].set(clf_w.astype(f32))
    cb = jnp.zeros((1, Cp), f32).at[0, :C].set(clf_b.astype(f32).reshape(C))

    # W tile: a multiple of 8 that divides W (else the whole of W).
    tw = W
    for cand in (256, 128, 64, 32, 16, 8):
        if W % cand == 0:
            tw = cand
            break

    # NCHW consumed directly: free trailing unit dim, batch*channel folded into
    # the leading block dim (no wrapper transpose / extra HBM round trip of x).
    x_k = x.astype(f32).reshape(B * Cin, H, W, 1)

    kernel = functools.partial(_sed_kernel, out_scale=1.0 / (W * H))

    out = pl.pallas_call(
        kernel,
        out_shape=jax.ShapeDtypeStruct((B, 1, Cp), f32),
        grid_spec=pltpu.PrefetchScalarGridSpec(
            num_scalar_prefetch=0,
            grid=(B, W // tw),                       # (batch, W-reduction, innermost)
            in_specs=[
                pl.BlockSpec((Cin, H, tw, 1), lambda b, w: (b, 0, w, 0)),
                pl.BlockSpec((Cin, 1, 1, Fp), lambda b, w: (0, 0, 0, 0)),
                pl.BlockSpec((1, 1, Fp), lambda b, w: (0, 0, 0)),
                pl.BlockSpec((Fp, Cp), lambda b, w: (0, 0)),
                pl.BlockSpec((1, Cp), lambda b, w: (0, 0)),
            ],
            out_specs=pl.BlockSpec((1, 1, Cp), lambda b, w: (b, 0, 0)),
            scratch_shapes=[pltpu.VMEM((H, Fp), jnp.float32)],
        ),
        compiler_params=pltpu.CompilerParams(
            # batch axis -> both TensorCores on v7x; W axis is the reduction.
            dimension_semantics=("parallel", "arbitrary"),
        ),
    )(x_k, sw, sb, cw, cb)

    return out[:, 0, :C]


# ---------------------------------------------------------------------------
# Plain-JAX reference (for the correctness check)
# ---------------------------------------------------------------------------
def ref_forward(x, stem_w, stem_b, clf_w, clf_b):
    feat = jnp.maximum(
        jnp.einsum("bchw,cf->bhwf", x.astype(jnp.float32), stem_w) + stem_b[0], 0.0)
    m = jnp.mean(feat, axis=2)                                   # mean over W -> [B,H,F]
    mn = jnp.pad(m, ((0, 0), (1, 1), (0, 0)), constant_values=-jnp.inf)
    x1 = jnp.maximum(jnp.maximum(mn[:, :-2], mn[:, 1:-1]), mn[:, 2:])
    mz = jnp.pad(m, ((0, 0), (1, 1), (0, 0)))
    x2 = (mz[:, :-2] + mz[:, 1:-1] + mz[:, 2:]) / 3.0
    h = jnp.mean(x1 + x2, axis=1)                                # mean over H -> [B,F]
    return h @ clf_w + clf_b[0]


if __name__ == "__main__":
    # Small shapes consistent with the module's forward:
    #   image [B, Cin, H, W] -> features [B, F, H, W] -> logits [B, C]
    B, Cin, H, W = 2, 4, 16, 16
    F = 32          # stand-in backbone feature channels (densenet121 would be 1024)
    C = 16          # num_classes (module default is 398; kept small here)

    key = jax.random.PRNGKey(0)
    k_x, k_sw, k_sb, k_cw, k_cb = jax.random.split(key, 5)

    x = jax.random.normal(k_x, (B, Cin, H, W), dtype=jnp.float32)
    stem_w = jax.random.normal(k_sw, (Cin, F), dtype=jnp.float32) * 0.1
    stem_b = jax.random.normal(k_sb, (1, F), dtype=jnp.float32) * 0.1
    clf_w = jax.random.normal(k_cw, (F, C), dtype=jnp.float32) * 0.1
    clf_b = jax.random.normal(k_cb, (1, C), dtype=jnp.float32) * 0.1

    out = jax.block_until_ready(sed_cnn_forward(x, stem_w, stem_b, clf_w, clf_b))
    ref = jax.block_until_ready(ref_forward(x, stem_w, stem_b, clf_w, clf_b))
    np.testing.assert_allclose(np.asarray(out), np.asarray(ref), rtol=1e-4, atol=1e-4)

    print("KERNEL_OK")
</pallas_src>

<mosaic_0001>
module attributes {stable_mosaic.version = 11 : i64} {
  func.func @_sed_kernel(%arg0: i32, %arg1: i32, %arg2: memref<4x16x16x1xf32, #tpu.memory_space<vmem>>, %arg3: memref<4x1x1x128xf32, #tpu.memory_space<vmem>>, %arg4: memref<1x1x128xf32, #tpu.memory_space<vmem>>, %arg5: memref<128x128xf32, #tpu.memory_space<vmem>>, %arg6: memref<1x128xf32, #tpu.memory_space<vmem>>, %arg7: memref<1x1x128xf32, #tpu.memory_space<vmem>>, %arg8: memref<16x128xf32, #tpu.memory_space<vmem>>) attributes {dimension_semantics = [#tpu.dimension_semantics<parallel>, #tpu.dimension_semantics<arbitrary>], iteration_bounds = array<i64: 2, 1>, scalar_prefetch = 0 : i64, scratch_operands = 1 : i64, tpu.core_type = #tpu.core_type<tc>, window_params = [{transform_indices = @transform_0, window_bounds = array<i64: 4, 16, 16, 1>}, {pipeline_mode = #tpu.pipeline_mode<synchronous>, transform_indices = @transform_1, window_bounds = array<i64: 4, 1, 1, 128>}, {pipeline_mode = #tpu.pipeline_mode<synchronous>, transform_indices = @transform_2, window_bounds = array<i64: 1, 1, 128>}, {pipeline_mode = #tpu.pipeline_mode<synchronous>, transform_indices = @transform_3, window_bounds = array<i64: 128, 128>}, {pipeline_mode = #tpu.pipeline_mode<synchronous>, transform_indices = @transform_4, window_bounds = array<i64: 1, 128>}, {transform_indices = @transform_5, window_bounds = array<i64: 1, 1, 128>}]} {
    %c0_i32 = arith.constant 0 : i32
    %0 = arith.cmpi eq, %arg1, %c0_i32 : i32
    %1 = arith.extui %0 : i1 to i32
    %c0_i32_0 = arith.constant 0 : i32
    %2 = arith.cmpi ne, %1, %c0_i32_0 : i32
    scf.if %2 {
      %cst_39 = arith.constant 0.000000e+00 : f32
      %46 = vector.broadcast %cst_39 : f32 to vector<16x128xf32>
      %c0_40 = arith.constant 0 : index
      %c0_41 = arith.constant 0 : index
      %47 = vector.load %arg8[%c0_40, %c0_41] : memref<16x128xf32, #tpu.memory_space<vmem>>, vector<16x128xf32>
      tpu.vector_store %arg8[%c0_40, %c0_41], %46 {strides = array<i32>} : memref<16x128xf32, #tpu.memory_space<vmem>>, vector<16x128xf32>,
    } else {
    }
    %c0 = arith.constant 0 : index
    %c0_1 = arith.constant 0 : index
    %c0_2 = arith.constant 0 : index
    %c0_3 = arith.constant 0 : index
    %3 = vector.load %arg2[%c0, %c0_1, %c0_2, %c0_3] : memref<4x16x16x1xf32, #tpu.memory_space<vmem>>, vector<1x16x16x1xf32>
    %4 = vector.shape_cast %3 : vector<1x16x16x1xf32> to vector<16x16x1xf32>
    %c0_4 = arith.constant 0 : index
    %c0_5 = arith.constant 0 : index
    %c0_6 = arith.constant 0 : index
    %c0_7 = arith.constant 0 : index
    %5 = vector.load %arg3[%c0_4, %c0_5, %c0_6, %c0_7] : memref<4x1x1x128xf32, #tpu.memory_space<vmem>>, vector<1x1x1x128xf32>
    %6 = vector.shape_cast %5 : vector<1x1x1x128xf32> to vector<1x1x128xf32>
    %7 = vector.broadcast %4 : vector<16x16x1xf32> to vector<16x16x128xf32>
    %8 = vector.broadcast %6 : vector<1x1x128xf32> to vector<16x16x128xf32>
    %9 = arith.mulf %7, %8 : vector<16x16x128xf32>
    %c1 = arith.constant 1 : index
    %c0_8 = arith.constant 0 : index
    %c0_9 = arith.constant 0 : index
    %c0_10 = arith.constant 0 : index
    %10 = vector.load %arg2[%c1, %c0_8, %c0_9, %c0_10] : memref<4x16x16x1xf32, #tpu.memory_space<vmem>>, vector<1x16x16x1xf32>
    %11 = vector.shape_cast %10 : vector<1x16x16x1xf32> to vector<16x16x1xf32>
    %c1_11 = arith.constant 1 : index
    %c0_12 = arith.constant 0 : index
    %c0_13 = arith.constant 0 : index
    %c0_14 = arith.constant 0 : index
    %12 = vector.load %arg3[%c1_11, %c0_12, %c0_13, %c0_14] : memref<4x1x1x128xf32, #tpu.memory_space<vmem>>, vector<1x1x1x128xf32>
    %13 = vector.shape_cast %12 : vector<1x1x1x128xf32> to vector<1x1x128xf32>
    %14 = vector.broadcast %11 : vector<16x16x1xf32> to vector<16x16x128xf32>
    %15 = vector.broadcast %13 : vector<1x1x128xf32> to vector<16x16x128xf32>
    %16 = arith.mulf %14, %15 : vector<16x16x128xf32>
    %17 = arith.addf %9, %16 : vector<16x16x128xf32>
    %c2 = arith.constant 2 : index
    %c0_15 = arith.constant 0 : index
    %c0_16 = arith.constant 0 : index
    %c0_17 = arith.constant 0 : index
    %18 = vector.load %arg2[%c2, %c0_15, %c0_16, %c0_17] : memref<4x16x16x1xf32, #tpu.memory_space<vmem>>, vector<1x16x16x1xf32>
    %19 = vector.shape_cast %18 : vector<1x16x16x1xf32> to vector<16x16x1xf32>
    %c2_18 = arith.constant 2 : index
    %c0_19 = arith.constant 0 : index
    %c0_20 = arith.constant 0 : index
    %c0_21 = arith.constant 0 : index
    %20 = vector.load %arg3[%c2_18, %c0_19, %c0_20, %c0_21] : memref<4x1x1x128xf32, #tpu.memory_space<vmem>>, vector<1x1x1x128xf32>
    %21 = vector.shape_cast %20 : vector<1x1x1x128xf32> to vector<1x1x128xf32>
    %22 = vector.broadcast %19 : vector<16x16x1xf32> to vector<16x16x128xf32>
    %23 = vector.broadcast %21 : vector<1x1x128xf32> to vector<16x16x128xf32>
    %24 = arith.mulf %22, %23 : vector<16x16x128xf32>
    %25 = arith.addf %17, %24 : vector<16x16x128xf32>
    %c3 = arith.constant 3 : index
    %c0_22 = arith.constant 0 : index
    %c0_23 = arith.constant 0 : index
    %c0_24 = arith.constant 0 : index
    %26 = vector.load %arg2[%c3, %c0_22, %c0_23, %c0_24] : memref<4x16x16x1xf32, #tpu.memory_space<vmem>>, vector<1x16x16x1xf32>
    %27 = vector.shape_cast %26 : vector<1x16x16x1xf32> to vector<16x16x1xf32>
    %c3_25 = arith.constant 3 : index
    %c0_26 = arith.constant 0 : index
    %c0_27 = arith.constant 0 : index
    %c0_28 = arith.constant 0 : index
    %28 = vector.load %arg3[%c3_25, %c0_26, %c0_27, %c0_28] : memref<4x1x1x128xf32, #tpu.memory_space<vmem>>, vector<1x1x1x128xf32>
    %29 = vector.shape_cast %28 : vector<1x1x1x128xf32> to vector<1x1x128xf32>
    %30 = vector.broadcast %27 : vector<16x16x1xf32> to vector<16x16x128xf32>
    %31 = vector.broadcast %29 : vector<1x1x128xf32> to vector<16x16x128xf32>
    %32 = arith.mulf %30, %31 : vector<16x16x128xf32>
    %33 = arith.addf %25, %32 : vector<16x16x128xf32>
    %c0_29 = arith.constant 0 : index
    %c0_30 = arith.constant 0 : index
    %c0_31 = arith.constant 0 : index
    %34 = vector.load %arg4[%c0_29, %c0_30, %c0_31] : memref<1x1x128xf32, #tpu.memory_space<vmem>>, vector<1x1x128xf32>
    %35 = vector.broadcast %34 : vector<1x1x128xf32> to vector<16x16x128xf32>
    %36 = arith.addf %33, %35 : vector<16x16x128xf32>
    %cst = arith.constant 0.000000e+00 : f32
    %37 = vector.broadcast %cst : f32 to vector<16x16x128xf32>
    %38 = arith.maximumf %36, %37 : vector<16x16x128xf32>
    %c0_32 = arith.constant 0 : index
    %c0_33 = arith.constant 0 : index
    %39 = vector.load %arg8[%c0_32, %c0_33] : memref<16x128xf32, #tpu.memory_space<vmem>>, vector<16x128xf32>
    %cst_34 = arith.constant dense<0.000000e+00> : vector<16x128xf32>
    %40 = vector.multi_reduction <add>, %38, %cst_34 [1] : vector<16x16x128xf32> to vector<16x128xf32>
    %41 = arith.addf %39, %40 : vector<16x128xf32>
    %c0_35 = arith.constant 0 : index
    %c0_36 = arith.constant 0 : index
    %42 = vector.load %arg8[%c0_35, %c0_36] : memref<16x128xf32, #tpu.memory_space<vmem>>, vector<16x128xf32>
    tpu.vector_store %arg8[%c0_35, %c0_36], %41 {strides = array<i32>} : memref<16x128xf32, #tpu.memory_space<vmem>>, vector<16x128xf32>,
    %c0_i32_37 = arith.constant 0 : i32
    %43 = arith.cmpi eq, %arg1, %c0_i32_37 : i32
    %44 = arith.extui %43 : i1 to i32
    %c0_i32_38 = arith.constant 0 : i32
    %45 = arith.cmpi ne, %44, %c0_i32_38 : i32
    scf.if %45 {
      %c0_39 = arith.constant 0 : index
      %c0_40 = arith.constant 0 : index
      %46 = vector.load %arg8[%c0_39, %c0_40] : memref<16x128xf32, #tpu.memory_space<vmem>>, vector<16x128xf32>
      %47 = tpu.iota {dimensions = array<i32: 0>} : vector<16x16xi32>
      %48 = tpu.iota {dimensions = array<i32: 1>} : vector<16x16xi32>
      %c1_i32 = arith.constant 1 : i32
      %49 = vector.broadcast %c1_i32 : i32 to vector<16x16xi32>
      %50 = arith.addi %48, %49 : vector<16x16xi32>
      %51 = arith.cmpi eq, %47, %50 : vector<16x16xi32>
      %52 = arith.extui %51 : vector<16x16xi1> to vector<16x16xi32>
      %53 = arith.sitofp %52 : vector<16x16xi32> to vector<16x16xf32>
      %c1_i32_41 = arith.constant 1 : i32
      %54 = vector.broadcast %c1_i32_41 : i32 to vector<16x16xi32>
      %55 = arith.addi %47, %54 : vector<16x16xi32>
      %56 = arith.cmpi eq, %55, %48 : vector<16x16xi32>
      %57 = arith.extui %56 : vector<16x16xi1> to vector<16x16xi32>
      %58 = arith.sitofp %57 : vector<16x16xi32> to vector<16x16xf32>
      %cst_42 = arith.constant dense<0.000000e+00> : vector<16x128xf32>
      %59 = tpu.matmul %53, %46, %cst_42 {dimension_numbers = #tpu.dot_dimension_numbers<[1], [0], [0], [1], [0, 0, 1, 1], [], []>} : vector<16x16xf32>, vector<16x128xf32>, vector<16x128xf32> -> vector<16x128xf32>
      %cst_43 = arith.constant dense<0.000000e+00> : vector<16x128xf32>
      %60 = tpu.matmul %58, %46, %cst_43 {dimension_numbers = #tpu.dot_dimension_numbers<[1], [0], [0], [1], [0, 0, 1, 1], [], []>} : vector<16x16xf32>, vector<16x128xf32>, vector<16x128xf32> -> vector<16x128xf32>
      %61 = tpu.iota {dimensions = array<i32: 0>} : vector<16x128xi32>
      %c0_i32_44 = arith.constant 0 : i32
      %62 = vector.broadcast %c0_i32_44 : i32 to vector<16x128xi32>
      %63 = arith.cmpi eq, %61, %62 : vector<16x128xi32>
      %cst_45 = arith.constant 0xFF800000 : f32
      %64 = vector.broadcast %cst_45 : f32 to vector<16x128xf32>
      %65 = arith.select %63, %64, %59 : vector<16x128xi1>, vector<16x128xf32>
      %c15_i32 = arith.constant 15 : i32
      %66 = vector.broadcast %c15_i32 : i32 to vector<16x128xi32>
      %67 = arith.cmpi eq, %61, %66 : vector<16x128xi32>
      %cst_46 = arith.constant 0xFF800000 : f32
      %68 = vector.broadcast %cst_46 : f32 to vector<16x128xf32>
      %69 = arith.select %67, %68, %60 : vector<16x128xi1>, vector<16x128xf32>
      %70 = arith.maximumf %65, %46 : vector<16x128xf32>
      %71 = arith.maximumf %70, %69 : vector<16x128xf32>
      %72 = arith.addf %59, %46 : vector<16x128xf32>
      %73 = arith.addf %72, %60 : vector<16x128xf32>
      %cst_47 = arith.constant 0.333333343 : f32
      %74 = vector.broadcast %cst_47 : f32 to vector<16x128xf32>
      %75 = arith.mulf %73, %74 : vector<16x128xf32>
      %76 = arith.addf %71, %75 : vector<16x128xf32>
      %cst_48 = arith.constant dense<0.000000e+00> : vector<128xf32>
      %77 = vector.multi_reduction <add>, %76, %cst_48 [0] : vector<16x128xf32> to vector<128xf32>
      %78 = vector.shape_cast %77 : vector<128xf32> to vector<1x128xf32>
      %cst_49 = arith.constant 3.906250e-03 : f32
      %79 = vector.broadcast %cst_49 : f32 to vector<1x128xf32>
      %80 = arith.mulf %78, %79 : vector<1x128xf32>
      %c0_50 = arith.constant 0 : index
      %c0_51 = arith.constant 0 : index
      %81 = vector.load %arg5[%c0_50, %c0_51] : memref<128x128xf32, #tpu.memory_space<vmem>>, vector<128x128xf32>
      %cst_52 = arith.constant dense<0.000000e+00> : vector<1x128xf32>
      %82 = tpu.matmul %80, %81, %cst_52 {dimension_numbers = #tpu.dot_dimension_numbers<[1], [0], [0], [1], [0, 0, 1, 1], [], []>} : vector<1x128xf32>, vector<128x128xf32>, vector<1x128xf32> -> vector<1x128xf32>
      %c0_53 = arith.constant 0 : index
      %c0_54 = arith.constant 0 : index
      %83 = vector.load %arg6[%c0_53, %c0_54] : memref<1x128xf32, #tpu.memory_space<vmem>>, vector<1x128xf32>
      %84 = arith.addf %82, %83 : vector<1x128xf32>
      %c0_55 = arith.constant 0 : index
      %c0_56 = arith.constant 0 : index
      %c0_57 = arith.constant 0 : index
      %85 = vector.load %arg7[%c0_55, %c0_56, %c0_57] : memref<1x1x128xf32, #tpu.memory_space<vmem>>, vector<1x1x128xf32>
      %86 = vector.shape_cast %85 : vector<1x1x128xf32> to vector<1x128xf32>
      %87 = vector.shape_cast %84 : vector<1x128xf32> to vector<1x1x128xf32>
      tpu.vector_store %arg7[%c0_55, %c0_56, %c0_57], %87 {strides = array<i32>} : memref<1x1x128xf32, #tpu.memory_space<vmem>>, vector<1x1x128xf32>,
    } else {
    }
    return
  }
  func.func @transform_0(%arg0: i32, %arg1: i32) -> (i32, i32, i32, i32) {
    %c0_i32 = arith.constant 0 : i32
    %c0_i32_0 = arith.constant 0 : i32
    %c0_i32_1 = arith.constant 0 : i32
    return %arg0, %c0_i32, %arg1, %c0_i32_0 : i32, i32, i32, i32
  }
  func.func @transform_1(%arg0: i32, %arg1: i32) -> (i32, i32, i32, i32) {
    %c0_i32 = arith.constant 0 : i32
    %c0_i32_0 = arith.constant 0 : i32
    %c0_i32_1 = arith.constant 0 : i32
    %c0_i32_2 = arith.constant 0 : i32
    %c0_i32_3 = arith.constant 0 : i32
    return %c0_i32, %c0_i32_0, %c0_i32_1, %c0_i32_2 : i32, i32, i32, i32
  }
  func.func @transform_2(%arg0: i32, %arg1: i32) -> (i32, i32, i32) {
    %c0_i32 = arith.constant 0 : i32
    %c0_i32_0 = arith.constant 0 : i32
    %c0_i32_1 = arith.constant 0 : i32
    %c0_i32_2 = arith.constant 0 : i32
    return %c0_i32, %c0_i32_0, %c0_i32_1 : i32, i32, i32
  }
  func.func @transform_3(%arg0: i32, %arg1: i32) -> (i32, i32) {
    %c0_i32 = arith.constant 0 : i32
    %c0_i32_0 = arith.constant 0 : i32
    %c0_i32_1 = arith.constant 0 : i32
    return %c0_i32, %c0_i32_0 : i32, i32
  }
  func.func @transform_4(%arg0: i32, %arg1: i32) -> (i32, i32) {
    %c0_i32 = arith.constant 0 : i32
    %c0_i32_0 = arith.constant 0 : i32
    %c0_i32_1 = arith.constant 0 : i32
    return %c0_i32, %c0_i32_0 : i32, i32
  }
  func.func @transform_5(%arg0: i32, %arg1: i32) -> (i32, i32, i32) {
    %c0_i32 = arith.constant 0 : i32
    %c0_i32_0 = arith.constant 0 : i32
    %c0_i32_1 = arith.constant 0 : i32
    return %arg0, %c0_i32, %c0_i32_0 : i32, i32, i32
  }
}

</mosaic_0001>

<llo_original>
// kernel: sed_cnn_forward.1
$region0: #{sed_cnn_forward.1}
  #allocation0 [shape = 'u32[]', space=smem, size = 0x4, offset = 0x4, fixed_abs, tag = 'smem constant byte address 0x4 - core index']
  #allocation1 [shape = 'u32[72,128]{1,0:T(1,128)}', space=vmem, size = 0x9000, scoped, tag = 'internal scratch']
  #allocation2 [shape = 'f32[16,128]{1,0:T(8,128)}', space=vmem, size = 0x2000, scoped, tag = 'scratch operand']
  %s0 = inlined_call_operand.vmem [shape: f32[8,16,16,1], index: 0, kind: input, shape index: {}]
  %s1 = inlined_call_operand.vmem [shape: f32[4,1,1,128], index: 1, kind: input, shape index: {}]
  %s2 = inlined_call_operand.vmem [shape: f32[1,1,128], index: 2, kind: input, shape index: {}]
  %s3 = inlined_call_operand.vmem [shape: f32[128,128], index: 3, kind: input, shape index: {}]
  %s4 = inlined_call_operand.vmem [shape: f32[1,128], index: 4, kind: input, shape index: {}]
  %s5 = inlined_call_operand.hbm [shape: f32[2,1,128], index: 5, kind: output, shape index: {}]
  %s6 = sld [smem:[#allocation0]]
  $region61: #{sed_cnn_forward.1} parent=0
    _
  %s8 = ssub.s32 1, %s6
  %s9 = scalar_select 0, %s8, %s6
  $region1: #{sed_cnn_forward.1} parent=0
    #allocation3 [shape = 'u8[1024]{0}', space=vmem, size = 0x400, scoped, tag = 'output window, operand 0']
    #allocation4 [shape = 's32[2]{0}', space=sflag, size = 0x8, scoped, tag = 'scoped memory for sed_cnn_forward.1']
    %10 = vsyncpa [#allocation4], 0
    %s11 = scalar_lea.sflag [#allocation4], 1
    %12 = vsyncpa %s11, 0
    loop: start=0, step=1, limit=4
    $region2: #{sed_cnn_forward.1} parent=1 // loop_pre_header
      _
    $region3: #{sed_cnn_forward.1} parent=1 // loop_header
      %s14 = sphi 0, %s18
      %p15 = scmp.ge.s32.totalorder %s14, 4
      %s21 = sphi 0, %s33
      %s22 = sphi 0, %s29
      %s23 = sphi 0, %s21
      %s24 = sphi 0, %s22
      %s25 = sphi 0, %s23
      %s26 = sphi 0, %s24
      %s38 = sphi 0, %s40
      %s41 = sphi 0, %s38
      %s42 = sphi 0, %s41
      %s58 = sphi 0, %s42
      %s62 = sphi 0, %s62
      %s64 = sphi 0, %s62
      %s65 = sphi 0, %s64
      %s79 = sphi 0, %s65
      %s83 = sphi 0, %s83
      %s85 = sphi 0, %s83
      %s86 = sphi 0, %s85
      %s100 = sphi 0, %s86
      %s104 = sphi 0, %s104
      %s106 = sphi 0, %s104
      %s107 = sphi 0, %s106
      %s121 = sphi 0, %s107
      %s125 = sphi 0, %s125
      %s127 = sphi 0, %s125
      %s128 = sphi 0, %s127
      %s142 = sphi 0, %s128
      %s148 = sphi 0, %s150
      %s151 = sphi 0, %s148
      %s152 = sphi 0, %s151
      %s168 = sphi 0, %s152
    $region4: #{sed_cnn_forward.1} parent=1 // loop_header_branch
      %17 = sbr.rel (%p15) target = $region8
    $region5: #{sed_cnn_forward.1} parent=1 // loop_body
      %s19 = ssub.s32 %s14, 1
      %s20 = ssub.s32 %s14, 2
      %s27 = sadd.s32 1, %s22
      %p28 = scmp.ge.s32.totalorder %s27, 1
      %s29 = scalar_select %p28, 0, %s27
      %s30 = sadd.s32 1, %s21
      %s31 = scalar_select %p28, %s30, %s21
      %p32 = scmp.ge.s32.totalorder %s31, 2
      %s33 = scalar_select %p32, 0, %s31
      %s34 = ssub.s32 %s21, %s33
      %s35 = ssub.s32 %s22, %s29
      %s36 = sor.u32 %s34, %s35
      %p37 = scmp.eq.s32.totalorder %s36, 0
      %s39 = sadd.s32 %s38, 1
      %s40 = scalar_select %p37, %s38, %s39
      %p43 = pneg %p37
      %p44 = scmp.eq.s32.totalorder %s14, 1
      %p45 = por %p43, %p44
      %p46 = scmp.ne.s32.totalorder %s38, %s41
      %p47 = scmp.eq.s32.totalorder %s14, 0
      %p48 = por %p46, %p47
      %p49 = scmp.ne.s32.totalorder %s38, %s41
      %p50 = scmp.eq.s32.totalorder %s19, 1
      %p51 = por %p49, %p50
      %p52 = scmp.ne.s32.totalorder %s41, %s42
      %p53 = scmp.eq.s32.totalorder %s19, 0
      %p54 = por %p52, %p53
      %p55 = scmp.ne.s32.totalorder %s41, %s42
      %p56 = scmp.eq.s32.totalorder %s20, 1
      %p57 = por %p55, %p56
      %p59 = scmp.ne.s32.totalorder %s42, %s58
      %p60 = scmp.eq.s32.totalorder %s20, 0
      %p61 = por %p59, %p60
      %s63 = sadd.s32 %s62, 1
      %p66 = scmp.eq.s32.totalorder %s14, 1
      %p67 = scmp.ne.s32.totalorder %s62, %s64
      %p68 = scmp.eq.s32.totalorder %s14, 0
      %p69 = por %p67, %p68
      %p70 = scmp.ne.s32.totalorder %s62, %s64
      %p71 = scmp.eq.s32.totalorder %s19, 1
      %p72 = por %p70, %p71
      %p73 = scmp.ne.s32.totalorder %s64, %s65
      %p74 = scmp.eq.s32.totalorder %s19, 0
      %p75 = por %p73, %p74
      %p76 = scmp.ne.s32.totalorder %s64, %s65
      %p77 = scmp.eq.s32.totalorder %s20, 1
      %p78 = por %p76, %p77
      %p80 = scmp.ne.s32.totalorder %s65, %s79
      %p81 = scmp.eq.s32.totalorder %s20, 0
      %p82 = por %p80, %p81
      %s84 = sadd.s32 %s83, 1
      %p87 = scmp.eq.s32.totalorder %s14, 1
      %p88 = scmp.ne.s32.totalorder %s83, %s85
      %p89 = scmp.eq.s32.totalorder %s14, 0
      %p90 = por %p88, %p89
      %p91 = scmp.ne.s32.totalorder %s83, %s85
      %p92 = scmp.eq.s32.totalorder %s19, 1
      %p93 = por %p91, %p92
      %p94 = scmp.ne.s32.totalorder %s85, %s86
      %p95 = scmp.eq.s32.totalorder %s19, 0
      %p96 = por %p94, %p95
      %p97 = scmp.ne.s32.totalorder %s85, %s86
      %p98 = scmp.eq.s32.totalorder %s20, 1
      %p99 = por %p97, %p98
      %p101 = scmp.ne.s32.totalorder %s86, %s100
      %p102 = scmp.eq.s32.totalorder %s20, 0
      %p103 = por %p101, %p102
      %s105 = sadd.s32 %s104, 1
      %p108 = scmp.eq.s32.totalorder %s14, 1
      %p109 = scmp.ne.s32.totalorder %s104, %s106
      %p110 = scmp.eq.s32.totalorder %s14, 0
      %p111 = por %p109, %p110
      %p112 = scmp.ne.s32.totalorder %s104, %s106
      %p113 = scmp.eq.s32.totalorder %s19, 1
      %p114 = por %p112, %p113
      %p115 = scmp.ne.s32.totalorder %s106, %s107
      %p116 = scmp.eq.s32.totalorder %s19, 0
      %p117 = por %p115, %p116
      %p118 = scmp.ne.s32.totalorder %s106, %s107
      %p119 = scmp.eq.s32.totalorder %s20, 1
      %p120 = por %p118, %p119
      %p122 = scmp.ne.s32.totalorder %s107, %s121
      %p123 = scmp.eq.s32.totalorder %s20, 0
      %p124 = por %p122, %p123
      %s126 = sadd.s32 %s125, 1
      %p129 = scmp.eq.s32.totalorder %s14, 1
      %p130 = scmp.ne.s32.totalorder %s125, %s127
      %p131 = scmp.eq.s32.totalorder %s14, 0
      %p132 = por %p130, %p131
      %p133 = scmp.ne.s32.totalorder %s125, %s127
      %p134 = scmp.eq.s32.totalorder %s19, 1
      %p135 = por %p133, %p134
      %p136 = scmp.ne.s32.totalorder %s127, %s128
      %p137 = scmp.eq.s32.totalorder %s19, 0
      %p138 = por %p136, %p137
      %p139 = scmp.ne.s32.totalorder %s127, %s128
      %p140 = scmp.eq.s32.totalorder %s20, 1
      %p141 = por %p139, %p140
      %p143 = scmp.ne.s32.totalorder %s128, %s142
      %p144 = scmp.eq.s32.totalorder %s20, 0
      %p145 = por %p143, %p144
      %s146 = ssub.s32 %s21, %s33
      %p147 = scmp.eq.s32.totalorder %s146, 0
      %s149 = sadd.s32 %s148, 1
      %s150 = scalar_select %p147, %s148, %s149
      %p153 = pneg %p147
      %p154 = scmp.eq.s32.totalorder %s14, 1
      %p155 = por %p153, %p154
      %p156 = scmp.ne.s32.totalorder %s148, %s151
      %p157 = scmp.eq.s32.totalorder %s14, 0
      %p158 = por %p156, %p157
      %p159 = scmp.ne.s32.totalorder %s148, %s151
      %p160 = scmp.eq.s32.totalorder %s19, 1
      %p161 = por %p159, %p160
      %p162 = scmp.ne.s32.totalorder %s151, %s152
      %p163 = scmp.eq.s32.totalorder %s19, 0
      %p164 = por %p162, %p163
      %p165 = scmp.ne.s32.totalorder %s151, %s152
      %p166 = scmp.eq.s32.totalorder %s20, 1
      %p167 = por %p165, %p166
      %p169 = scmp.ne.s32.totalorder %s152, %s168
      %p170 = scmp.eq.s32.totalorder %s20, 0
      %p171 = por %p169, %p170
      %p172 = scmp.le.s32.totalorder 1, %s14
      %p173 = scmp.lt.s32.totalorder %s14, 3
      %p174 = pnand %p172, %p173
      %p175 = pneg %p174
      // Predicated region
      $region9: #{sed_cnn_forward.1} parent=5 // pred_check
        _
      $region10: #{sed_cnn_forward.1} parent=5 // pred_check_branch
        %177 = sbr.rel (%p174) target = $region12
      $region11: #{sed_cnn_forward.1} parent=5 // pred_region
        %s178 = ssub.s32 %s14, 1
        // Predicated region
        $region13: #{sed_cnn_forward.1} parent=11 // pred_check
          %p179 = pneg %p75
        $region14: #{sed_cnn_forward.1} parent=11 // pred_check_branch
          %181 = sbr.rel (%p179) target = $region16
        $region15: #{sed_cnn_forward.1} parent=11 // pred_region
          _
        $region16: #{sed_cnn_forward.1} parent=11 // pred_fallthru
          _
        // Predicated region
        $region17: #{sed_cnn_forward.1} parent=11 // pred_check
          %p182 = pneg %p96
        $region18: #{sed_cnn_forward.1} parent=11 // pred_check_branch
          %184 = sbr.rel (%p182) target = $region20
        $region19: #{sed_cnn_forward.1} parent=11 // pred_region
          _
        $region20: #{sed_cnn_forward.1} parent=11 // pred_fallthru
          _
        // Predicated region
        $region21: #{sed_cnn_forward.1} parent=11 // pred_check
          %p185 = pneg %p117
        $region22: #{sed_cnn_forward.1} parent=11 // pred_check_branch
          %187 = sbr.rel (%p185) target = $region24
        $region23: #{sed_cnn_forward.1} parent=11 // pred_region
          _
        $region24: #{sed_cnn_forward.1} parent=11 // pred_fallthru
          _
        // Predicated region
        $region25: #{sed_cnn_forward.1} parent=11 // pred_check
          %p188 = pneg %p138
        $region26: #{sed_cnn_forward.1} parent=11 // pred_check_branch
          %190 = sbr.rel (%p188) target = $region28
        $region27: #{sed_cnn_forward.1} parent=11 // pred_region
          _
        $region28: #{sed_cnn_forward.1} parent=11 // pred_fallthru
          _
      $region12: #{sed_cnn_forward.1} parent=5 // pred_fallthru
        _
      %p191 = scmp.lt.s32.totalorder %s14, 2
      // Predicated region
      $region29: #{sed_cnn_forward.1} parent=5 // pred_check
        %p192 = pneg %p191
      $region30: #{sed_cnn_forward.1} parent=5 // pred_check_branch
        %194 = sbr.rel (%p192) target = $region32
      $region31: #{sed_cnn_forward.1} parent=5 // pred_region
        // Predicated region
        $region33: #{sed_cnn_forward.1} parent=31 // pred_check
          %p195 = pneg %p48
        $region34: #{sed_cnn_forward.1} parent=31 // pred_check_branch
          %197 = sbr.rel (%p195) target = $region36
        $region35: #{sed_cnn_forward.1} parent=31 // pred_region
          %s198 = smul.u32 4, %s21
          %s199 = smul.u32 2, %s22
          %p200 = scmp.lt.s32.totalorder %s198, 7
          %s201 = scalar_select %p200, %s198, 7
          %p202 = scmp.lt.s32.totalorder %s199, 1
          %s203 = scalar_select %p202, %s199, 1
          %s204 = smul.addr %s201, 32
          %s205 = sadd.s32 %s203, %s204
          %s206 = smul.addr %s205, 8
          %s207 = scalar_lea.vmem %s0, %s206
          %s208 = smul.u32 4, %s21
          %s209 = smul.u32 2, %s22
        $region36: #{sed_cnn_forward.1} parent=31 // pred_fallthru
          _
      $region32: #{sed_cnn_forward.1} parent=5 // pred_fallthru
        _
      %p210 = scmp.le.s32.totalorder 1, %s14
      %p211 = scmp.lt.s32.totalorder %s14, 3
      %p212 = pnand %p210, %p211
      %p213 = pneg %p212
      // Predicated region
      $region37: #{sed_cnn_forward.1} parent=5 // pred_check
        _
      $region38: #{sed_cnn_forward.1} parent=5 // pred_check_branch
        %215 = sbr.rel (%p212) target = $region40
      $region39: #{sed_cnn_forward.1} parent=5 // pred_region
        %s216 = ssub.s32 %s14, 1
        %s217 = smul.u32 4, %s23
        %s218 = smul.u32 2, %s24
        %p219 = scmp.lt.s32.totalorder %s217, 7
        %s220 = scalar_select %p219, %s217, 7
        %p221 = scmp.lt.s32.totalorder %s218, 1
        %s222 = scalar_select %p221, %s218, 1
        %s223 = smul.addr %s220, 32
        %s224 = sadd.s32 %s222, %s223
        %s225 = smul.addr %s224, 8
        %s226 = scalar_lea.vmem %s0, %s225
        %p227 = pneg %p54
        %p228 = pneg %p51
        %p229 = pneg %p75
        %p230 = pneg %p72
        %p231 = pneg %p96
        %p232 = pneg %p93
        %p233 = pneg %p117
        %p234 = pneg %p114
        %p235 = pneg %p138
        %p236 = pneg %p135
        %p237 = pneg %p164
        %p238 = pneg %p161
        %s239 = sand.u32 %s151, 1
        %s240 = scalar_lea.sflag [#allocation4], %s239
        %s241 = sand.u32 %s151, 1
        %s242 = scalar_lea.vmem [#allocation3], %s241
        %s243 = smul.u32 4, %s23
        %s244 = smul.u32 2, %s24
        %p245 = scmp.lt.s32.totalorder %s243, 7
        %s246 = scalar_select %p245, %s243, 7
        %p247 = scmp.lt.s32.totalorder %s244, 1
        %s248 = scalar_select %p247, %s244, 1
        %s249 = smul.addr %s246, 32
        %s250 = sadd.s32 %s248, %s249
        %s251 = smul.addr %s250, 8
        %s252 = scalar_lea.vmem %s0, %s251
        %s253 = smul.u32 4, %s23
        %s254 = smul.u32 2, %s24
        %p255 = scmp.eq.s32.totalorder %s24, 0
        // Predicated region
        $region41: #{sed_cnn_forward.1} parent=39 // pred_check
          %p256 = pneg %p255
        $region42: #{sed_cnn_forward.1} parent=39 // pred_check_branch
          %258 = sbr.rel (%p256) target = $region44
        $region43: #{sed_cnn_forward.1} parent=39 // pred_region
          %259 = vst [vmem:[#allocation2] sm:$0xff] 0.0
          %260 = vst [vmem:[#allocation2 + $0x8] sm:$0xff] 0.0
        $region44: #{sed_cnn_forward.1} parent=39 // pred_fallthru
          _
        %v261 = vld [vmem:[%s252] sm:$0xff]
        %v262 = vld [vmem:[%s252 + $0x8] sm:$0xff]
        %v263 = vld [vmem:[%s252 + $0x10] sm:$0xff]
        %v264 = vld [vmem:[%s252 + $0x18] sm:$0xff]
        %v265 = vld [vmem:[%s252 + $0x20] sm:$0xff]
        %v266 = vld [vmem:[%s252 + $0x28] sm:$0xff]
        %v267 = vld [vmem:[%s252 + $0x30] sm:$0xff]
        %v268 = vld [vmem:[%s252 + $0x38] sm:$0xff]
        %v269 = vld [vmem:[%s252 + $0x40] sm:$0xff]
        %v270 = vld [vmem:[%s252 + $0x48] sm:$0xff]
        %v271 = vld [vmem:[%s252 + $0x50] sm:$0xff]
        %v272 = vld [vmem:[%s252 + $0x58] sm:$0xff]
        %v273 = vld [vmem:[%s252 + $0x60] sm:$0xff]
        %v274 = vld [vmem:[%s252 + $0x68] sm:$0xff]
        %v275 = vld [vmem:[%s252 + $0x70] sm:$0xff]
        %v276 = vld [vmem:[%s252 + $0x78] sm:$0xff]
        %v277 = vld [vmem:[%s252 + $0x80] sm:$0xff]
        %v278 = vld [vmem:[%s252 + $0x88] sm:$0xff]
        %v279 = vld [vmem:[%s252 + $0x90] sm:$0xff]
        %v280 = vld [vmem:[%s252 + $0x98] sm:$0xff]
        %v281 = vld [vmem:[%s252 + $0xa0] sm:$0xff]
        %v282 = vld [vmem:[%s252 + $0xa8] sm:$0xff]
        %v283 = vld [vmem:[%s252 + $0xb0] sm:$0xff]
        %v284 = vld [vmem:[%s252 + $0xb8] sm:$0xff]
        %v285 = vld [vmem:[%s252 + $0xc0] sm:$0xff]
        %v286 = vld [vmem:[%s252 + $0xc8] sm:$0xff]
        %v287 = vld [vmem:[%s252 + $0xd0] sm:$0xff]
        %v288 = vld [vmem:[%s252 + $0xd8] sm:$0xff]
        %v289 = vld [vmem:[%s252 + $0xe0] sm:$0xff]
        %v290 = vld [vmem:[%s252 + $0xe8] sm:$0xff]
        %v291 = vld [vmem:[%s252 + $0xf0] sm:$0xff]
        %v292 = vld [vmem:[%s252 + $0xf8] sm:$0xff]
        %v293 = vld [vmem:[%s1] sm:$0x1]
        %295 = vset.pattern.permute.xlu0 0
        %296 = vperm.xlu0 %295, %v261
        %v297 = vpop.permute.xlu0 %296
        %300 = vset.pattern.permute.xlu0 0
        %301 = vperm.xlu0 %300, %v262
        %v302 = vpop.permute.xlu0 %301
        %305 = vset.pattern.permute.xlu0 0
        %306 = vperm.xlu0 %305, %v263
        %v307 = vpop.permute.xlu0 %306
        %310 = vset.pattern.permute.xlu0 0
        %311 = vperm.xlu0 %310, %v264
        %v312 = vpop.permute.xlu0 %311
        %315 = vset.pattern.permute.xlu0 0
        %316 = vperm.xlu0 %315, %v265
        %v317 = vpop.permute.xlu0 %316
        %320 = vset.pattern.permute.xlu0 0
        %321 = vperm.xlu0 %320, %v266
        %v322 = vpop.permute.xlu0 %321
        %325 = vset.pattern.permute.xlu0 0
        %326 = vperm.xlu0 %325, %v267
        %v327 = vpop.permute.xlu0 %326
        %330 = vset.pattern.permute.xlu0 0
        %331 = vperm.xlu0 %330, %v268
        %v332 = vpop.permute.xlu0 %331
        %335 = vset.pattern.permute.xlu0 0
        %336 = vperm.xlu0 %335, %v269
        %v337 = vpop.permute.xlu0 %336
        %340 = vset.pattern.permute.xlu0 0
        %341 = vperm.xlu0 %340, %v270
        %v342 = vpop.permute.xlu0 %341
        %345 = vset.pattern.permute.xlu0 0
        %346 = vperm.xlu0 %345, %v271
        %v347 = vpop.permute.xlu0 %346
        %350 = vset.pattern.permute.xlu0 0
        %351 = vperm.xlu0 %350, %v272
        %v352 = vpop.permute.xlu0 %351
        %355 = vset.pattern.permute.xlu0 0
        %356 = vperm.xlu0 %355, %v273
        %v357 = vpop.permute.xlu0 %356
        %360 = vset.pattern.permute.xlu0 0
        %361 = vperm.xlu0 %360, %v274
        %v362 = vpop.permute.xlu0 %361
        %365 = vset.pattern.permute.xlu0 0
        %366 = vperm.xlu0 %365, %v275
        %v367 = vpop.permute.xlu0 %366
        %370 = vset.pattern.permute.xlu0 0
        %371 = vperm.xlu0 %370, %v276
        %v372 = vpop.permute.xlu0 %371
        %375 = vset.pattern.permute.xlu0 0
        %376 = vperm.xlu0 %375, %v277
        %v377 = vpop.permute.xlu0 %376
        %380 = vset.pattern.permute.xlu0 0
        %381 = vperm.xlu0 %380, %v278
        %v382 = vpop.permute.xlu0 %381
        %385 = vset.pattern.permute.xlu0 0
        %386 = vperm.xlu0 %385, %v279
        %v387 = vpop.permute.xlu0 %386
        %390 = vset.pattern.permute.xlu0 0
        %391 = vperm.xlu0 %390, %v280
        %v392 = vpop.permute.xlu0 %391
        %395 = vset.pattern.permute.xlu0 0
        %396 = vperm.xlu0 %395, %v281
        %v397 = vpop.permute.xlu0 %396
        %400 = vset.pattern.permute.xlu0 0
        %401 = vperm.xlu0 %400, %v282
        %v402 = vpop.permute.xlu0 %401
        %405 = vset.pattern.permute.xlu0 0
        %406 = vperm.xlu0 %405, %v283
        %v407 = vpop.permute.xlu0 %406
        %410 = vset.pattern.permute.xlu0 0
        %411 = vperm.xlu0 %410, %v284
        %v412 = vpop.permute.xlu0 %411
        %415 = vset.pattern.permute.xlu0 0
        %416 = vperm.xlu0 %415, %v285
        %v417 = vpop.permute.xlu0 %416
        %420 = vset.pattern.permute.xlu0 0
        %421 = vperm.xlu0 %420, %v286
        %v422 = vpop.permute.xlu0 %421
        %425 = vset.pattern.permute.xlu0 0
        %426 = vperm.xlu0 %425, %v287
        %v427 = vpop.permute.xlu0 %426
        %430 = vset.pattern.permute.xlu0 0
        %431 = vperm.xlu0 %430, %v288
        %v432 = vpop.permute.xlu0 %431
        %435 = vset.pattern.permute.xlu0 0
        %436 = vperm.xlu0 %435, %v289
        %v437 = vpop.permute.xlu0 %436
        %440 = vset.pattern.permute.xlu0 0
        %441 = vperm.xlu0 %440, %v290
        %v442 = vpop.permute.xlu0 %441
        %445 = vset.pattern.permute.xlu0 0
        %446 = vperm.xlu0 %445, %v291
        %v447 = vpop.permute.xlu0 %446
        %450 = vset.pattern.permute.xlu0 0
        %451 = vperm.xlu0 %450, %v292
        %v452 = vpop.permute.xlu0 %451
        %v455 = vperm.slane %v293, 0
        %v457 = vmul.f32 %v297, %v455
        %v458 = vmul.f32 %v302, %v455
        %v459 = vmul.f32 %v307, %v455
        %v460 = vmul.f32 %v312, %v455
        %v461 = vmul.f32 %v317, %v455
        %v462 = vmul.f32 %v322, %v455
        %v463 = vmul.f32 %v327, %v455
        %v464 = vmul.f32 %v332, %v455
        %v465 = vmul.f32 %v337, %v455
        %v466 = vmul.f32 %v342, %v455
        %v467 = vmul.f32 %v347, %v455
        %v468 = vmul.f32 %v352, %v455
        %v469 = vmul.f32 %v357, %v455
        %v470 = vmul.f32 %v362, %v455
        %v471 = vmul.f32 %v367, %v455
        %v472 = vmul.f32 %v372, %v455
        %v473 = vmul.f32 %v377, %v455
        %v474 = vmul.f32 %v382, %v455
        %v475 = vmul.f32 %v387, %v455
        %v476 = vmul.f32 %v392, %v455
        %v477 = vmul.f32 %v397, %v455
        %v478 = vmul.f32 %v402, %v455
        %v479 = vmul.f32 %v407, %v455
        %v480 = vmul.f32 %v412, %v455
        %v481 = vmul.f32 %v417, %v455
        %v482 = vmul.f32 %v422, %v455
        %v483 = vmul.f32 %v427, %v455
        %v484 = vmul.f32 %v432, %v455
        %v485 = vmul.f32 %v437, %v455
        %v486 = vmul.f32 %v442, %v455
        %v487 = vmul.f32 %v447, %v455
        %v488 = vmul.f32 %v452, %v455
        %s489 = scalar_lea.vmem %s252, 256
        %v490 = vld [vmem:[%s489] sm:$0xff]
        %v491 = vld [vmem:[%s489 + $0x8] sm:$0xff]
        %v492 = vld [vmem:[%s489 + $0x10] sm:$0xff]
        %v493 = vld [vmem:[%s489 + $0x18] sm:$0xff]
        %v494 = vld [vmem:[%s489 + $0x20] sm:$0xff]
        %v495 = vld [vmem:[%s489 + $0x28] sm:$0xff]
        %v496 = vld [vmem:[%s489 + $0x30] sm:$0xff]
        %v497 = vld [vmem:[%s489 + $0x38] sm:$0xff]
        %v498 = vld [vmem:[%s489 + $0x40] sm:$0xff]
        %v499 = vld [vmem:[%s489 + $0x48] sm:$0xff]
        %v500 = vld [vmem:[%s489 + $0x50] sm:$0xff]
        %v501 = vld [vmem:[%s489 + $0x58] sm:$0xff]
        %v502 = vld [vmem:[%s489 + $0x60] sm:$0xff]
        %v503 = vld [vmem:[%s489 + $0x68] sm:$0xff]
        %v504 = vld [vmem:[%s489 + $0x70] sm:$0xff]
        %v505 = vld [vmem:[%s489 + $0x78] sm:$0xff]
        %v506 = vld [vmem:[%s489 + $0x80] sm:$0xff]
        %v507 = vld [vmem:[%s489 + $0x88] sm:$0xff]
        %v508 = vld [vmem:[%s489 + $0x90] sm:$0xff]
        %v509 = vld [vmem:[%s489 + $0x98] sm:$0xff]
        %v510 = vld [vmem:[%s489 + $0xa0] sm:$0xff]
        %v511 = vld [vmem:[%s489 + $0xa8] sm:$0xff]
        %v512 = vld [vmem:[%s489 + $0xb0] sm:$0xff]
        %v513 = vld [vmem:[%s489 + $0xb8] sm:$0xff]
        %v514 = vld [vmem:[%s489 + $0xc0] sm:$0xff]
        %v515 = vld [vmem:[%s489 + $0xc8] sm:$0xff]
        %v516 = vld [vmem:[%s489 + $0xd0] sm:$0xff]
        %v517 = vld [vmem:[%s489 + $0xd8] sm:$0xff]
        %v518 = vld [vmem:[%s489 + $0xe0] sm:$0xff]
        %v519 = vld [vmem:[%s489 + $0xe8] sm:$0xff]
        %v520 = vld [vmem:[%s489 + $0xf0] sm:$0xff]
        %v521 = vld [vmem:[%s489 + $0xf8] sm:$0xff]
        %s522 = scalar_lea.vmem %s1, 1
        %v523 = vld [vmem:[%s522] sm:$0x1]
        %525 = vset.pattern.permute.xlu0 0
        %526 = vperm.xlu0 %525, %v490
        %v527 = vpop.permute.xlu0 %526
        %530 = vset.pattern.permute.xlu0 0
        %531 = vperm.xlu0 %530, %v491
        %v532 = vpop.permute.xlu0 %531
        %535 = vset.pattern.permute.xlu0 0
        %536 = vperm.xlu0 %535, %v492
        %v537 = vpop.permute.xlu0 %536
        %540 = vset.pattern.permute.xlu0 0
        %541 = vperm.xlu0 %540, %v493
        %v542 = vpop.permute.xlu0 %541
        %545 = vset.pattern.permute.xlu0 0
        %546 = vperm.xlu0 %545, %v494
        %v547 = vpop.permute.xlu0 %546
        %550 = vset.pattern.permute.xlu0 0
        %551 = vperm.xlu0 %550, %v495
        %v552 = vpop.permute.xlu0 %551
        %555 = vset.pattern.permute.xlu0 0
        %556 = vperm.xlu0 %555, %v496
        %v557 = vpop.permute.xlu0 %556
        %560 = vset.pattern.permute.xlu0 0
        %561 = vperm.xlu0 %560, %v497
        %v562 = vpop.permute.xlu0 %561
        %565 = vset.pattern.permute.xlu0 0
        %566 = vperm.xlu0 %565, %v498
        %v567 = vpop.permute.xlu0 %566
        %570 = vset.pattern.permute.xlu0 0
        %571 = vperm.xlu0 %570, %v499
        %v572 = vpop.permute.xlu0 %571
        %575 = vset.pattern.permute.xlu0 0
        %576 = vperm.xlu0 %575, %v500
        %v577 = vpop.permute.xlu0 %576
        %580 = vset.pattern.permute.xlu0 0
        %581 = vperm.xlu0 %580, %v501
        %v582 = vpop.permute.xlu0 %581
        %585 = vset.pattern.permute.xlu0 0
        %586 = vperm.xlu0 %585, %v502
        %v587 = vpop.permute.xlu0 %586
        %590 = vset.pattern.permute.xlu0 0
        %591 = vperm.xlu0 %590, %v503
        %v592 = vpop.permute.xlu0 %591
        %595 = vset.pattern.permute.xlu0 0
        %596 = vperm.xlu0 %595, %v504
        %v597 = vpop.permute.xlu0 %596
        %600 = vset.pattern.permute.xlu0 0
        %601 = vperm.xlu0 %600, %v505
        %v602 = vpop.permute.xlu0 %601
        %605 = vset.pattern.permute.xlu0 0
        %606 = vperm.xlu0 %605, %v506
        %v607 = vpop.permute.xlu0 %606
        %610 = vset.pattern.permute.xlu0 0
        %611 = vperm.xlu0 %610, %v507
        %v612 = vpop.permute.xlu0 %611
        %615 = vset.pattern.permute.xlu0 0
        %616 = vperm.xlu0 %615, %v508
        %v617 = vpop.permute.xlu0 %616
        %620 = vset.pattern.permute.xlu0 0
        %621 = vperm.xlu0 %620, %v509
        %v622 = vpop.permute.xlu0 %621
        %625 = vset.pattern.permute.xlu0 0
        %626 = vperm.xlu0 %625, %v510
        %v627 = vpop.permute.xlu0 %626
        %630 = vset.pattern.permute.xlu0 0
        %631 = vperm.xlu0 %630, %v511
        %v632 = vpop.permute.xlu0 %631
        %635 = vset.pattern.permute.xlu0 0
        %636 = vperm.xlu0 %635, %v512
        %v637 = vpop.permute.xlu0 %636
        %640 = vset.pattern.permute.xlu0 0
        %641 = vperm.xlu0 %640, %v513
        %v642 = vpop.permute.xlu0 %641
        %645 = vset.pattern.permute.xlu0 0
        %646 = vperm.xlu0 %645, %v514
        %v647 = vpop.permute.xlu0 %646
        %650 = vset.pattern.permute.xlu0 0
        %651 = vperm.xlu0 %650, %v515
        %v652 = vpop.permute.xlu0 %651
        %655 = vset.pattern.permute.xlu0 0
        %656 = vperm.xlu0 %655, %v516
        %v657 = vpop.permute.xlu0 %656
        %660 = vset.pattern.permute.xlu0 0
        %661 = vperm.xlu0 %660, %v517
        %v662 = vpop.permute.xlu0 %661
        %665 = vset.pattern.permute.xlu0 0
        %666 = vperm.xlu0 %665, %v518
        %v667 = vpop.permute.xlu0 %666
        %670 = vset.pattern.permute.xlu0 0
        %671 = vperm.xlu0 %670, %v519
        %v672 = vpop.permute.xlu0 %671
        %675 = vset.pattern.permute.xlu0 0
        %676 = vperm.xlu0 %675, %v520
        %v677 = vpop.permute.xlu0 %676
        %680 = vset.pattern.permute.xlu0 0
        %681 = vperm.xlu0 %680, %v521
        %v682 = vpop.permute.xlu0 %681
        %v685 = vperm.slane %v523, 0
        %v687 = vmul.f32 %v527, %v685
        %v688 = vmul.f32 %v532, %v685
        %v689 = vmul.f32 %v537, %v685
        %v690 = vmul.f32 %v542, %v685
        %v691 = vmul.f32 %v547, %v685
        %v692 = vmul.f32 %v552, %v685
        %v693 = vmul.f32 %v557, %v685
        %v694 = vmul.f32 %v562, %v685
        %v695 = vmul.f32 %v567, %v685
        %v696 = vmul.f32 %v572, %v685
        %v697 = vmul.f32 %v577, %v685
        %v698 = vmul.f32 %v582, %v685
        %v699 = vmul.f32 %v587, %v685
        %v700 = vmul.f32 %v592, %v685
        %v701 = vmul.f32 %v597, %v685
        %v702 = vmul.f32 %v602, %v685
        %v703 = vmul.f32 %v607, %v685
        %v704 = vmul.f32 %v612, %v685
        %v705 = vmul.f32 %v617, %v685
        %v706 = vmul.f32 %v622, %v685
        %v707 = vmul.f32 %v627, %v685
        %v708 = vmul.f32 %v632, %v685
        %v709 = vmul.f32 %v637, %v685
        %v710 = vmul.f32 %v642, %v685
        %v711 = vmul.f32 %v647, %v685
        %v712 = vmul.f32 %v652, %v685
        %v713 = vmul.f32 %v657, %v685
        %v714 = vmul.f32 %v662, %v685
        %v715 = vmul.f32 %v667, %v685
        %v716 = vmul.f32 %v672, %v685
        %v717 = vmul.f32 %v677, %v685
        %v718 = vmul.f32 %v682, %v685
        %v719 = vadd.f32 %v457, %v687
        %v720 = vadd.f32 %v458, %v688
        %v721 = vadd.f32 %v459, %v689
        %v722 = vadd.f32 %v460, %v690
        %v723 = vadd.f32 %v461, %v691
        %v724 = vadd.f32 %v462, %v692
        %v725 = vadd.f32 %v463, %v693
        %v726 = vadd.f32 %v464, %v694
        %v727 = vadd.f32 %v465, %v695
        %v728 = vadd.f32 %v466, %v696
        %v729 = vadd.f32 %v467, %v697
        %v730 = vadd.f32 %v468, %v698
        %v731 = vadd.f32 %v469, %v699
        %v732 = vadd.f32 %v470, %v700
        %v733 = vadd.f32 %v471, %v701
        %v734 = vadd.f32 %v472, %v702
        %v735 = vadd.f32 %v473, %v703
        %v736 = vadd.f32 %v474, %v704
        %v737 = vadd.f32 %v475, %v705
        %v738 = vadd.f32 %v476, %v706
        %v739 = vadd.f32 %v477, %v707
        %v740 = vadd.f32 %v478, %v708
        %v741 = vadd.f32 %v479, %v709
        %v742 = vadd.f32 %v480, %v710
        %v743 = vadd.f32 %v481, %v711
        %v744 = vadd.f32 %v482, %v712
        %v745 = vadd.f32 %v483, %v713
        %v746 = vadd.f32 %v484, %v714
        %v747 = vadd.f32 %v485, %v715
        %v748 = vadd.f32 %v486, %v716
        %v749 = vadd.f32 %v487, %v717
        %v750 = vadd.f32 %v488, %v718
        %s751 = scalar_lea.vmem %s252, 512
        %v752 = vld [vmem:[%s751] sm:$0xff]
        %v753 = vld [vmem:[%s751 + $0x8] sm:$0xff]
        %v754 = vld [vmem:[%s751 + $0x10] sm:$0xff]
        %v755 = vld [vmem:[%s751 + $0x18] sm:$0xff]
        %v756 = vld [vmem:[%s751 + $0x20] sm:$0xff]
        %v757 = vld [vmem:[%s751 + $0x28] sm:$0xff]
        %v758 = vld [vmem:[%s751 + $0x30] sm:$0xff]
        %v759 = vld [vmem:[%s751 + $0x38] sm:$0xff]
        %v760 = vld [vmem:[%s751 + $0x40] sm:$0xff]
        %v761 = vld [vmem:[%s751 + $0x48] sm:$0xff]
        %v762 = vld [vmem:[%s751 + $0x50] sm:$0xff]
        %v763 = vld [vmem:[%s751 + $0x58] sm:$0xff]
        %v764 = vld [vmem:[%s751 + $0x60] sm:$0xff]
        %v765 = vld [vmem:[%s751 + $0x68] sm:$0xff]
        %v766 = vld [vmem:[%s751 + $0x70] sm:$0xff]
        %v767 = vld [vmem:[%s751 + $0x78] sm:$0xff]
        %v768 = vld [vmem:[%s751 + $0x80] sm:$0xff]
        %v769 = vld [vmem:[%s751 + $0x88] sm:$0xff]
        %v770 = vld [vmem:[%s751 + $0x90] sm:$0xff]
        %v771 = vld [vmem:[%s751 + $0x98] sm:$0xff]
        %v772 = vld [vmem:[%s751 + $0xa0] sm:$0xff]
        %v773 = vld [vmem:[%s751 + $0xa8] sm:$0xff]
        %v774 = vld [vmem:[%s751 + $0xb0] sm:$0xff]
        %v775 = vld [vmem:[%s751 + $0xb8] sm:$0xff]
        %v776 = vld [vmem:[%s751 + $0xc0] sm:$0xff]
        %v777 = vld [vmem:[%s751 + $0xc8] sm:$0xff]
        %v778 = vld [vmem:[%s751 + $0xd0] sm:$0xff]
        %v779 = vld [vmem:[%s751 + $0xd8] sm:$0xff]
        %v780 = vld [vmem:[%s751 + $0xe0] sm:$0xff]
        %v781 = vld [vmem:[%s751 + $0xe8] sm:$0xff]
        %v782 = vld [vmem:[%s751 + $0xf0] sm:$0xff]
        %v783 = vld [vmem:[%s751 + $0xf8] sm:$0xff]
        %s784 = scalar_lea.vmem %s1, 2
        %v785 = vld [vmem:[%s784] sm:$0x1]
        %787 = vset.pattern.permute.xlu0 0
        %788 = vperm.xlu0 %787, %v752
        %v789 = vpop.permute.xlu0 %788
        %792 = vset.pattern.permute.xlu0 0
        %793 = vperm.xlu0 %792, %v753
        %v794 = vpop.permute.xlu0 %793
        %797 = vset.pattern.permute.xlu0 0
        %798 = vperm.xlu0 %797, %v754
        %v799 = vpop.permute.xlu0 %798
        %802 = vset.pattern.permute.xlu0 0
        %803 = vperm.xlu0 %802, %v755
        %v804 = vpop.permute.xlu0 %803
        %807 = vset.pattern.permute.xlu0 0
        %808 = vperm.xlu0 %807, %v756
        %v809 = vpop.permute.xlu0 %808
        %812 = vset.pattern.permute.xlu0 0
        %813 = vperm.xlu0 %812, %v757
        %v814 = vpop.permute.xlu0 %813
        %817 = vset.pattern.permute.xlu0 0
        %818 = vperm.xlu0 %817, %v758
        %v819 = vpop.permute.xlu0 %818
        %822 = vset.pattern.permute.xlu0 0
        %823 = vperm.xlu0 %822, %v759
        %v824 = vpop.permute.xlu0 %823
        %827 = vset.pattern.permute.xlu0 0
        %828 = vperm.xlu0 %827, %v760
        %v829 = vpop.permute.xlu0 %828
        %832 = vset.pattern.permute.xlu0 0
        %833 = vperm.xlu0 %832, %v761
        %v834 = vpop.permute.xlu0 %833
        %837 = vset.pattern.permute.xlu0 0
        %838 = vperm.xlu0 %837, %v762
        %v839 = vpop.permute.xlu0 %838
        %842 = vset.pattern.permute.xlu0 0
        %843 = vperm.xlu0 %842, %v763
        %v844 = vpop.permute.xlu0 %843
        %847 = vset.pattern.permute.xlu0 0
        %848 = vperm.xlu0 %847, %v764
        %v849 = vpop.permute.xlu0 %848
        %852 = vset.pattern.permute.xlu0 0
        %853 = vperm.xlu0 %852, %v765
        %v854 = vpop.permute.xlu0 %853
        %857 = vset.pattern.permute.xlu0 0
        %858 = vperm.xlu0 %857, %v766
        %v859 = vpop.permute.xlu0 %858
        %862 = vset.pattern.permute.xlu0 0
        %863 = vperm.xlu0 %862, %v767
        %v864 = vpop.permute.xlu0 %863
        %867 = vset.pattern.permute.xlu0 0
        %868 = vperm.xlu0 %867, %v768
        %v869 = vpop.permute.xlu0 %868
        %872 = vset.pattern.permute.xlu0 0
        %873 = vperm.xlu0 %872, %v769
        %v874 = vpop.permute.xlu0 %873
        %877 = vset.pattern.permute.xlu0 0
        %878 = vperm.xlu0 %877, %v770
        %v879 = vpop.permute.xlu0 %878
        %882 = vset.pattern.permute.xlu0 0
        %883 = vperm.xlu0 %882, %v771
        %v884 = vpop.permute.xlu0 %883
        %887 = vset.pattern.permute.xlu0 0
        %888 = vperm.xlu0 %887, %v772
        %v889 = vpop.permute.xlu0 %888
        %892 = vset.pattern.permute.xlu0 0
        %893 = vperm.xlu0 %892, %v773
        %v894 = vpop.permute.xlu0 %893
        %897 = vset.pattern.permute.xlu0 0
        %898 = vperm.xlu0 %897, %v774
        %v899 = vpop.permute.xlu0 %898
        %902 = vset.pattern.permute.xlu0 0
        %903 = vperm.xlu0 %902, %v775
        %v904 = vpop.permute.xlu0 %903
        %907 = vset.pattern.permute.xlu0 0
        %908 = vperm.xlu0 %907, %v776
        %v909 = vpop.permute.xlu0 %908
        %912 = vset.pattern.permute.xlu0 0
        %913 = vperm.xlu0 %912, %v777
        %v914 = vpop.permute.xlu0 %913
        %917 = vset.pattern.permute.xlu0 0
        %918 = vperm.xlu0 %917, %v778
        %v919 = vpop.permute.xlu0 %918
        %922 = vset.pattern.permute.xlu0 0
        %923 = vperm.xlu0 %922, %v779
        %v924 = vpop.permute.xlu0 %923
        %927 = vset.pattern.permute.xlu0 0
        %928 = vperm.xlu0 %927, %v780
        %v929 = vpop.permute.xlu0 %928
        %932 = vset.pattern.permute.xlu0 0
        %933 = vperm.xlu0 %932, %v781
        %v934 = vpop.permute.xlu0 %933
        %937 = vset.pattern.permute.xlu0 0
        %938 = vperm.xlu0 %937, %v782
        %v939 = vpop.permute.xlu0 %938
        %942 = vset.pattern.permute.xlu0 0
        %943 = vperm.xlu0 %942, %v783
        %v944 = vpop.permute.xlu0 %943
        %v947 = vperm.slane %v785, 0
        %v949 = vmul.f32 %v789, %v947
        %v950 = vmul.f32 %v794, %v947
        %v951 = vmul.f32 %v799, %v947
        %v952 = vmul.f32 %v804, %v947
        %v953 = vmul.f32 %v809, %v947
        %v954 = vmul.f32 %v814, %v947
        %v955 = vmul.f32 %v819, %v947
        %v956 = vmul.f32 %v824, %v947
        %v957 = vmul.f32 %v829, %v947
        %v958 = vmul.f32 %v834, %v947
        %v959 = vmul.f32 %v839, %v947
        %v960 = vmul.f32 %v844, %v947
        %v961 = vmul.f32 %v849, %v947
        %v962 = vmul.f32 %v854, %v947
        %v963 = vmul.f32 %v859, %v947
        %v964 = vmul.f32 %v864, %v947
        %v965 = vmul.f32 %v869, %v947
        %v966 = vmul.f32 %v874, %v947
        %v967 = vmul.f32 %v879, %v947
        %v968 = vmul.f32 %v884, %v947
        %v969 = vmul.f32 %v889, %v947
        %v970 = vmul.f32 %v894, %v947
        %v971 = vmul.f32 %v899, %v947
        %v972 = vmul.f32 %v904, %v947
        %v973 = vmul.f32 %v909, %v947
        %v974 = vmul.f32 %v914, %v947
        %v975 = vmul.f32 %v919, %v947
        %v976 = vmul.f32 %v924, %v947
        %v977 = vmul.f32 %v929, %v947
        %v978 = vmul.f32 %v934, %v947
        %v979 = vmul.f32 %v939, %v947
        %v980 = vmul.f32 %v944, %v947
        %v981 = vadd.f32 %v719, %v949
        %v982 = vadd.f32 %v720, %v950
        %v983 = vadd.f32 %v721, %v951
        %v984 = vadd.f32 %v722, %v952
        %v985 = vadd.f32 %v723, %v953
        %v986 = vadd.f32 %v724, %v954
        %v987 = vadd.f32 %v725, %v955
        %v988 = vadd.f32 %v726, %v956
        %v989 = vadd.f32 %v727, %v957
        %v990 = vadd.f32 %v728, %v958
        %v991 = vadd.f32 %v729, %v959
        %v992 = vadd.f32 %v730, %v960
        %v993 = vadd.f32 %v731, %v961
        %v994 = vadd.f32 %v732, %v962
        %v995 = vadd.f32 %v733, %v963
        %v996 = vadd.f32 %v734, %v964
        %v997 = vadd.f32 %v735, %v965
        %v998 = vadd.f32 %v736, %v966
        %v999 = vadd.f32 %v737, %v967
        %v1000 = vadd.f32 %v738, %v968
        %v1001 = vadd.f32 %v739, %v969
        %v1002 = vadd.f32 %v740, %v970
        %v1003 = vadd.f32 %v741, %v971
        %v1004 = vadd.f32 %v742, %v972
        %v1005 = vadd.f32 %v743, %v973
        %v1006 = vadd.f32 %v744, %v974
        %v1007 = vadd.f32 %v745, %v975
        %v1008 = vadd.f32 %v746, %v976
        %v1009 = vadd.f32 %v747, %v977
        %v1010 = vadd.f32 %v748, %v978
        %v1011 = vadd.f32 %v749, %v979
        %v1012 = vadd.f32 %v750, %v980
        %s1013 = scalar_lea.vmem %s252, 768
        %v1014 = vld [vmem:[%s1013] sm:$0xff]
        %v1015 = vld [vmem:[%s1013 + $0x8] sm:$0xff]
        %v1016 = vld [vmem:[%s1013 + $0x10] sm:$0xff]
        %v1017 = vld [vmem:[%s1013 + $0x18] sm:$0xff]
        %v1018 = vld [vmem:[%s1013 + $0x20] sm:$0xff]
        %v1019 = vld [vmem:[%s1013 + $0x28] sm:$0xff]
        %v1020 = vld [vmem:[%s1013 + $0x30] sm:$0xff]
        %v1021 = vld [vmem:[%s1013 + $0x38] sm:$0xff]
        %v1022 = vld [vmem:[%s1013 + $0x40] sm:$0xff]
        %v1023 = vld [vmem:[%s1013 + $0x48] sm:$0xff]
        %v1024 = vld [vmem:[%s1013 + $0x50] sm:$0xff]
        %v1025 = vld [vmem:[%s1013 + $0x58] sm:$0xff]
        %v1026 = vld [vmem:[%s1013 + $0x60] sm:$0xff]
        %v1027 = vld [vmem:[%s1013 + $0x68] sm:$0xff]
        %v1028 = vld [vmem:[%s1013 + $0x70] sm:$0xff]
        %v1029 = vld [vmem:[%s1013 + $0x78] sm:$0xff]
        %v1030 = vld [vmem:[%s1013 + $0x80] sm:$0xff]
        %v1031 = vld [vmem:[%s1013 + $0x88] sm:$0xff]
        %v1032 = vld [vmem:[%s1013 + $0x90] sm:$0xff]
        %v1033 = vld [vmem:[%s1013 + $0x98] sm:$0xff]
        %v1034 = vld [vmem:[%s1013 + $0xa0] sm:$0xff]
        %v1035 = vld [vmem:[%s1013 + $0xa8] sm:$0xff]
        %v1036 = vld [vmem:[%s1013 + $0xb0] sm:$0xff]
        %v1037 = vld [vmem:[%s1013 + $0xb8] sm:$0xff]
        %v1038 = vld [vmem:[%s1013 + $0xc0] sm:$0xff]
        %v1039 = vld [vmem:[%s1013 + $0xc8] sm:$0xff]
        %v1040 = vld [vmem:[%s1013 + $0xd0] sm:$0xff]
        %v1041 = vld [vmem:[%s1013 + $0xd8] sm:$0xff]
        %v1042 = vld [vmem:[%s1013 + $0xe0] sm:$0xff]
        %v1043 = vld [vmem:[%s1013 + $0xe8] sm:$0xff]
        %v1044 = vld [vmem:[%s1013 + $0xf0] sm:$0xff]
        %v1045 = vld [vmem:[%s1013 + $0xf8] sm:$0xff]
        %s1046 = scalar_lea.vmem %s1, 3
        %v1047 = vld [vmem:[%s1046] sm:$0x1]
        %1049 = vset.pattern.permute.xlu0 0
        %1050 = vperm.xlu0 %1049, %v1014
        %v1051 = vpop.permute.xlu0 %1050
        %1054 = vset.pattern.permute.xlu0 0
        %1055 = vperm.xlu0 %1054, %v1015
        %v1056 = vpop.permute.xlu0 %1055
        %1059 = vset.pattern.permute.xlu0 0
        %1060 = vperm.xlu0 %1059, %v1016
        %v1061 = vpop.permute.xlu0 %1060
        %1064 = vset.pattern.permute.xlu0 0
        %1065 = vperm.xlu0 %1064, %v1017
        %v1066 = vpop.permute.xlu0 %1065
        %1069 = vset.pattern.permute.xlu0 0
        %1070 = vperm.xlu0 %1069, %v1018
        %v1071 = vpop.permute.xlu0 %1070
        %1074 = vset.pattern.permute.xlu0 0
        %1075 = vperm.xlu0 %1074, %v1019
        %v1076 = vpop.permute.xlu0 %1075
        %1079 = vset.pattern.permute.xlu0 0
        %1080 = vperm.xlu0 %1079, %v1020
        %v1081 = vpop.permute.xlu0 %1080
        %1084 = vset.pattern.permute.xlu0 0
        %1085 = vperm.xlu0 %1084, %v1021
        %v1086 = vpop.permute.xlu0 %1085
        %1089 = vset.pattern.permute.xlu0 0
        %1090 = vperm.xlu0 %1089, %v1022
        %v1091 = vpop.permute.xlu0 %1090
        %1094 = vset.pattern.permute.xlu0 0
        %1095 = vperm.xlu0 %1094, %v1023
        %v1096 = vpop.permute.xlu0 %1095
        %1099 = vset.pattern.permute.xlu0 0
        %1100 = vperm.xlu0 %1099, %v1024
        %v1101 = vpop.permute.xlu0 %1100
        %1104 = vset.pattern.permute.xlu0 0
        %1105 = vperm.xlu0 %1104, %v1025
        %v1106 = vpop.permute.xlu0 %1105
        %1109 = vset.pattern.permute.xlu0 0
        %1110 = vperm.xlu0 %1109, %v1026
        %v1111 = vpop.permute.xlu0 %1110
        %1114 = vset.pattern.permute.xlu0 0
        %1115 = vperm.xlu0 %1114, %v1027
        %v1116 = vpop.permute.xlu0 %1115
        %1119 = vset.pattern.permute.xlu0 0
        %1120 = vperm.xlu0 %1119, %v1028
        %v1121 = vpop.permute.xlu0 %1120
        %1124 = vset.pattern.permute.xlu0 0
        %1125 = vperm.xlu0 %1124, %v1029
        %v1126 = vpop.permute.xlu0 %1125
        %1129 = vset.pattern.permute.xlu0 0
        %1130 = vperm.xlu0 %1129, %v1030
        %v1131 = vpop.permute.xlu0 %1130
        %1134 = vset.pattern.permute.xlu0 0
        %1135 = vperm.xlu0 %1134, %v1031
        %v1136 = vpop.permute.xlu0 %1135
        %1139 = vset.pattern.permute.xlu0 0
        %1140 = vperm.xlu0 %1139, %v1032
        %v1141 = vpop.permute.xlu0 %1140
        %1144 = vset.pattern.permute.xlu0 0
        %1145 = vperm.xlu0 %1144, %v1033
        %v1146 = vpop.permute.xlu0 %1145
        %1149 = vset.pattern.permute.xlu0 0
        %1150 = vperm.xlu0 %1149, %v1034
        %v1151 = vpop.permute.xlu0 %1150
        %1154 = vset.pattern.permute.xlu0 0
        %1155 = vperm.xlu0 %1154, %v1035
        %v1156 = vpop.permute.xlu0 %1155
        %1159 = vset.pattern.permute.xlu0 0
        %1160 = vperm.xlu0 %1159, %v1036
        %v1161 = vpop.permute.xlu0 %1160
        %1164 = vset.pattern.permute.xlu0 0
        %1165 = vperm.xlu0 %1164, %v1037
        %v1166 = vpop.permute.xlu0 %1165
        %1169 = vset.pattern.permute.xlu0 0
        %1170 = vperm.xlu0 %1169, %v1038
        %v1171 = vpop.permute.xlu0 %1170
        %1174 = vset.pattern.permute.xlu0 0
        %1175 = vperm.xlu0 %1174, %v1039
        %v1176 = vpop.permute.xlu0 %1175
        %1179 = vset.pattern.permute.xlu0 0
        %1180 = vperm.xlu0 %1179, %v1040
        %v1181 = vpop.permute.xlu0 %1180
        %1184 = vset.pattern.permute.xlu0 0
        %1185 = vperm.xlu0 %1184, %v1041
        %v1186 = vpop.permute.xlu0 %1185
        %1189 = vset.pattern.permute.xlu0 0
        %1190 = vperm.xlu0 %1189, %v1042
        %v1191 = vpop.permute.xlu0 %1190
        %1194 = vset.pattern.permute.xlu0 0
        %1195 = vperm.xlu0 %1194, %v1043
        %v1196 = vpop.permute.xlu0 %1195
        %1199 = vset.pattern.permute.xlu0 0
        %1200 = vperm.xlu0 %1199, %v1044
        %v1201 = vpop.permute.xlu0 %1200
        %1204 = vset.pattern.permute.xlu0 0
        %1205 = vperm.xlu0 %1204, %v1045
        %v1206 = vpop.permute.xlu0 %1205
        %v1209 = vperm.slane %v1047, 0
        %v1211 = vmul.f32 %v1051, %v1209
        %v1212 = vmul.f32 %v1056, %v1209
        %v1213 = vmul.f32 %v1061, %v1209
        %v1214 = vmul.f32 %v1066, %v1209
        %v1215 = vmul.f32 %v1071, %v1209
        %v1216 = vmul.f32 %v1076, %v1209
        %v1217 = vmul.f32 %v1081, %v1209
        %v1218 = vmul.f32 %v1086, %v1209
        %v1219 = vmul.f32 %v1091, %v1209
        %v1220 = vmul.f32 %v1096, %v1209
        %v1221 = vmul.f32 %v1101, %v1209
        %v1222 = vmul.f32 %v1106, %v1209
        %v1223 = vmul.f32 %v1111, %v1209
        %v1224 = vmul.f32 %v1116, %v1209
        %v1225 = vmul.f32 %v1121, %v1209
        %v1226 = vmul.f32 %v1126, %v1209
        %v1227 = vmul.f32 %v1131, %v1209
        %v1228 = vmul.f32 %v1136, %v1209
        %v1229 = vmul.f32 %v1141, %v1209
        %v1230 = vmul.f32 %v1146, %v1209
        %v1231 = vmul.f32 %v1151, %v1209
        %v1232 = vmul.f32 %v1156, %v1209
        %v1233 = vmul.f32 %v1161, %v1209
        %v1234 = vmul.f32 %v1166, %v1209
        %v1235 = vmul.f32 %v1171, %v1209
        %v1236 = vmul.f32 %v1176, %v1209
        %v1237 = vmul.f32 %v1181, %v1209
        %v1238 = vmul.f32 %v1186, %v1209
        %v1239 = vmul.f32 %v1191, %v1209
        %v1240 = vmul.f32 %v1196, %v1209
        %v1241 = vmul.f32 %v1201, %v1209
        %v1242 = vmul.f32 %v1206, %v1209
        %v1243 = vadd.f32 %v981, %v1211
        %v1244 = vadd.f32 %v982, %v1212
        %v1245 = vadd.f32 %v983, %v1213
        %v1246 = vadd.f32 %v984, %v1214
        %v1247 = vadd.f32 %v985, %v1215
        %v1248 = vadd.f32 %v986, %v1216
        %v1249 = vadd.f32 %v987, %v1217
        %v1250 = vadd.f32 %v988, %v1218
        %v1251 = vadd.f32 %v989, %v1219
        %v1252 = vadd.f32 %v990, %v1220
        %v1253 = vadd.f32 %v991, %v1221
        %v1254 = vadd.f32 %v992, %v1222
        %v1255 = vadd.f32 %v993, %v1223
        %v1256 = vadd.f32 %v994, %v1224
        %v1257 = vadd.f32 %v995, %v1225
        %v1258 = vadd.f32 %v996, %v1226
        %v1259 = vadd.f32 %v997, %v1227
        %v1260 = vadd.f32 %v998, %v1228
        %v1261 = vadd.f32 %v999, %v1229
        %v1262 = vadd.f32 %v1000, %v1230
        %v1263 = vadd.f32 %v1001, %v1231
        %v1264 = vadd.f32 %v1002, %v1232
        %v1265 = vadd.f32 %v1003, %v1233
        %v1266 = vadd.f32 %v1004, %v1234
        %v1267 = vadd.f32 %v1005, %v1235
        %v1268 = vadd.f32 %v1006, %v1236
        %v1269 = vadd.f32 %v1007, %v1237
        %v1270 = vadd.f32 %v1008, %v1238
        %v1271 = vadd.f32 %v1009, %v1239
        %v1272 = vadd.f32 %v1010, %v1240
        %v1273 = vadd.f32 %v1011, %v1241
        %v1274 = vadd.f32 %v1012, %v1242
        %v1275 = vld [vmem:[%s2] sm:$0x1]
        %v1277 = vperm.slane %v1275, 0
        %v1279 = vadd.f32 %v1243, %v1277
        %v1280 = vadd.f32 %v1244, %v1277
        %v1281 = vadd.f32 %v1245, %v1277
        %v1282 = vadd.f32 %v1246, %v1277
        %v1283 = vadd.f32 %v1247, %v1277
        %v1284 = vadd.f32 %v1248, %v1277
        %v1285 = vadd.f32 %v1249, %v1277
        %v1286 = vadd.f32 %v1250, %v1277
        %v1287 = vadd.f32 %v1251, %v1277
        %v1288 = vadd.f32 %v1252, %v1277
        %v1289 = vadd.f32 %v1253, %v1277
        %v1290 = vadd.f32 %v1254, %v1277
        %v1291 = vadd.f32 %v1255, %v1277
        %v1292 = vadd.f32 %v1256, %v1277
        %v1293 = vadd.f32 %v1257, %v1277
        %v1294 = vadd.f32 %v1258, %v1277
        %v1295 = vadd.f32 %v1259, %v1277
        %v1296 = vadd.f32 %v1260, %v1277
        %v1297 = vadd.f32 %v1261, %v1277
        %v1298 = vadd.f32 %v1262, %v1277
        %v1299 = vadd.f32 %v1263, %v1277
        %v1300 = vadd.f32 %v1264, %v1277
        %v1301 = vadd.f32 %v1265, %v1277
        %v1302 = vadd.f32 %v1266, %v1277
        %v1303 = vadd.f32 %v1267, %v1277
        %v1304 = vadd.f32 %v1268, %v1277
        %v1305 = vadd.f32 %v1269, %v1277
        %v1306 = vadd.f32 %v1270, %v1277
        %v1307 = vadd.f32 %v1271, %v1277
        %v1308 = vadd.f32 %v1272, %v1277
        %v1309 = vadd.f32 %v1273, %v1277
        %v1310 = vadd.f32 %v1274, %v1277
        %v1311 = vmax.f32 %v1279, 0.0
        %v1312 = vmax.f32 %v1280, 0.0
        %v1313 = vmax.f32 %v1281, 0.0
        %v1314 = vmax.f32 %v1282, 0.0
        %v1315 = vmax.f32 %v1283, 0.0
        %v1316 = vmax.f32 %v1284, 0.0
        %v1317 = vmax.f32 %v1285, 0.0
        %v1318 = vmax.f32 %v1286, 0.0
        %v1319 = vmax.f32 %v1287, 0.0
        %v1320 = vmax.f32 %v1288, 0.0
        %v1321 = vmax.f32 %v1289, 0.0
        %v1322 = vmax.f32 %v1290, 0.0
        %v1323 = vmax.f32 %v1291, 0.0
        %v1324 = vmax.f32 %v1292, 0.0
        %v1325 = vmax.f32 %v1293, 0.0
        %v1326 = vmax.f32 %v1294, 0.0
        %v1327 = vmax.f32 %v1295, 0.0
        %v1328 = vmax.f32 %v1296, 0.0
        %v1329 = vmax.f32 %v1297, 0.0
        %v1330 = vmax.f32 %v1298, 0.0
        %v1331 = vmax.f32 %v1299, 0.0
        %v1332 = vmax.f32 %v1300, 0.0
        %v1333 = vmax.f32 %v1301, 0.0
        %v1334 = vmax.f32 %v1302, 0.0
        %v1335 = vmax.f32 %v1303, 0.0
        %v1336 = vmax.f32 %v1304, 0.0
        %v1337 = vmax.f32 %v1305, 0.0
        %v1338 = vmax.f32 %v1306, 0.0
        %v1339 = vmax.f32 %v1307, 0.0
        %v1340 = vmax.f32 %v1308, 0.0
        %v1341 = vmax.f32 %v1309, 0.0
        %v1342 = vmax.f32 %v1310, 0.0
        %v1343 = vld [vmem:[#allocation2] sm:$0xff]
        %v1344 = vld [vmem:[#allocation2 + $0x8] sm:$0xff]
        %v1345 = vadd.f32 %v1311, %v1312
        %v1346 = vrot.slane %v1345, 4
        %v1347 = vadd.f32 %v1345, %v1346
        %v1348 = vrot.slane %v1347, 2
        %v1349 = vadd.f32 %v1347, %v1348
        %v1350 = vrot.slane %v1349, 1
        %v1351 = vadd.f32 %v1349, %v1350
        %v1352 = vadd.f32 %v1313, %v1314
        %v1353 = vrot.slane %v1352, 4
        %v1354 = vadd.f32 %v1352, %v1353
        %v1355 = vrot.slane %v1354, 2
        %v1356 = vadd.f32 %v1354, %v1355
        %v1357 = vrot.slane %v1356, 1
        %v1358 = vadd.f32 %v1356, %v1357
        %v1359 = vadd.f32 %v1315, %v1316
        %v1360 = vrot.slane %v1359, 4
        %v1361 = vadd.f32 %v1359, %v1360
        %v1362 = vrot.slane %v1361, 2
        %v1363 = vadd.f32 %v1361, %v1362
        %v1364 = vrot.slane %v1363, 1
        %v1365 = vadd.f32 %v1363, %v1364
        %v1366 = vadd.f32 %v1317, %v1318
        %v1367 = vrot.slane %v1366, 4
        %v1368 = vadd.f32 %v1366, %v1367
        %v1369 = vrot.slane %v1368, 2
        %v1370 = vadd.f32 %v1368, %v1369
        %v1371 = vrot.slane %v1370, 1
        %v1372 = vadd.f32 %v1370, %v1371
        %v1373 = vadd.f32 %v1319, %v1320
        %v1374 = vrot.slane %v1373, 4
        %v1375 = vadd.f32 %v1373, %v1374
        %v1376 = vrot.slane %v1375, 2
        %v1377 = vadd.f32 %v1375, %v1376
        %v1378 = vrot.slane %v1377, 1
        %v1379 = vadd.f32 %v1377, %v1378
        %v1380 = vadd.f32 %v1321, %v1322
        %v1381 = vrot.slane %v1380, 4
        %v1382 = vadd.f32 %v1380, %v1381
        %v1383 = vrot.slane %v1382, 2
        %v1384 = vadd.f32 %v1382, %v1383
        %v1385 = vrot.slane %v1384, 1
        %v1386 = vadd.f32 %v1384, %v1385
        %v1387 = vadd.f32 %v1323, %v1324
        %v1388 = vrot.slane %v1387, 4
        %v1389 = vadd.f32 %v1387, %v1388
        %v1390 = vrot.slane %v1389, 2
        %v1391 = vadd.f32 %v1389, %v1390
        %v1392 = vrot.slane %v1391, 1
        %v1393 = vadd.f32 %v1391, %v1392
        %v1394 = vadd.f32 %v1325, %v1326
        %v1395 = vrot.slane %v1394, 4
        %v1396 = vadd.f32 %v1394, %v1395
        %v1397 = vrot.slane %v1396, 2
        %v1398 = vadd.f32 %v1396, %v1397
        %v1399 = vrot.slane %v1398, 1
        %v1400 = vadd.f32 %v1398, %v1399
        %v1401 = vadd.f32 %v1327, %v1328
        %v1402 = vrot.slane %v1401, 4
        %v1403 = vadd.f32 %v1401, %v1402
        %v1404 = vrot.slane %v1403, 2
        %v1405 = vadd.f32 %v1403, %v1404
        %v1406 = vrot.slane %v1405, 1
        %v1407 = vadd.f32 %v1405, %v1406
        %v1408 = vadd.f32 %v1329, %v1330
        %v1409 = vrot.slane %v1408, 4
        %v1410 = vadd.f32 %v1408, %v1409
        %v1411 = vrot.slane %v1410, 2
        %v1412 = vadd.f32 %v1410, %v1411
        %v1413 = vrot.slane %v1412, 1
        %v1414 = vadd.f32 %v1412, %v1413
        %v1415 = vadd.f32 %v1331, %v1332
        %v1416 = vrot.slane %v1415, 4
        %v1417 = vadd.f32 %v1415, %v1416
        %v1418 = vrot.slane %v1417, 2
        %v1419 = vadd.f32 %v1417, %v1418
        %v1420 = vrot.slane %v1419, 1
        %v1421 = vadd.f32 %v1419, %v1420
        %v1422 = vadd.f32 %v1333, %v1334
        %v1423 = vrot.slane %v1422, 4
        %v1424 = vadd.f32 %v1422, %v1423
        %v1425 = vrot.slane %v1424, 2
        %v1426 = vadd.f32 %v1424, %v1425
        %v1427 = vrot.slane %v1426, 1
        %v1428 = vadd.f32 %v1426, %v1427
        %v1429 = vadd.f32 %v1335, %v1336
        %v1430 = vrot.slane %v1429, 4
        %v1431 = vadd.f32 %v1429, %v1430
        %v1432 = vrot.slane %v1431, 2
        %v1433 = vadd.f32 %v1431, %v1432
        %v1434 = vrot.slane %v1433, 1
        %v1435 = vadd.f32 %v1433, %v1434
        %v1436 = vadd.f32 %v1337, %v1338
        %v1437 = vrot.slane %v1436, 4
        %v1438 = vadd.f32 %v1436, %v1437
        %v1439 = vrot.slane %v1438, 2
        %v1440 = vadd.f32 %v1438, %v1439
        %v1441 = vrot.slane %v1440, 1
        %v1442 = vadd.f32 %v1440, %v1441
        %v1443 = vadd.f32 %v1339, %v1340
        %v1444 = vrot.slane %v1443, 4
        %v1445 = vadd.f32 %v1443, %v1444
        %v1446 = vrot.slane %v1445, 2
        %v1447 = vadd.f32 %v1445, %v1446
        %v1448 = vrot.slane %v1447, 1
        %v1449 = vadd.f32 %v1447, %v1448
        %v1450 = vadd.f32 %v1341, %v1342
        %v1451 = vrot.slane %v1450, 4
        %v1452 = vadd.f32 %v1450, %v1451
        %v1453 = vrot.slane %v1452, 2
        %v1454 = vadd.f32 %v1452, %v1453
        %v1455 = vrot.slane %v1454, 1
        %v1456 = vadd.f32 %v1454, %v1455
        %vm1473 = vcmask 1041409
        %v1474 = vsel %vm1473, %v1358, %v1351
        %vm1475 = vcmask 1042434
        %v1476 = vsel %vm1475, %v1365, %v1474
        %vm1477 = vcmask 1043459
        %v1478 = vsel %vm1477, %v1372, %v1476
        %vm1479 = vcmask 1044484
        %v1480 = vsel %vm1479, %v1379, %v1478
        %vm1481 = vcmask 1045509
        %v1482 = vsel %vm1481, %v1386, %v1480
        %vm1483 = vcmask 1046534
        %v1484 = vsel %vm1483, %v1393, %v1482
        %vm1485 = vcmask 1047559
        %v1486 = vsel %vm1485, %v1400, %v1484
        %v1487 = vsel %vm1473, %v1414, %v1407
        %v1488 = vsel %vm1475, %v1421, %v1487
        %v1489 = vsel %vm1477, %v1428, %v1488
        %v1490 = vsel %vm1479, %v1435, %v1489
        %v1491 = vsel %vm1481, %v1442, %v1490
        %v1492 = vsel %vm1483, %v1449, %v1491
        %v1493 = vsel %vm1485, %v1456, %v1492
        %v1496 = vadd.f32 %v1343, %v1486
        %v1497 = vadd.f32 %v1344, %v1493
        %1498 = vst [vmem:[#allocation2] sm:$0xff] %v1496
        %1499 = vst [vmem:[#allocation2 + $0x8] sm:$0xff] %v1497
        // Predicated region
        $region45: #{sed_cnn_forward.1} parent=39 // pred_check
          %p1500 = pneg %p255
        $region46: #{sed_cnn_forward.1} parent=39 // pred_check_branch
          %1502 = sbr.rel (%p1500) target = $region48
        $region47: #{sed_cnn_forward.1} parent=39 // pred_region
          %v1503 = vld [vmem:[#allocation2] sm:$0xff]
          %v1504 = vld [vmem:[#allocation2 + $0x8] sm:$0xff]
          %v1505 = vlaneseq
          %v1506 = vshrl.u32 %v1505, 7
          %v1507 = vadd.s32 %v1506, 8
          %v1508 = vlaneseq
          %v1509 = vand.u32 %v1508, 127
          %v1510 = vadd.s32 %v1509, 1
          %vm1511 = vcmp.eq.s32.totalorder %v1506, %v1510
          %vm1512 = vcmp.eq.s32.totalorder %v1507, %v1510
          %v1513 = vsel %vm1511, 1, 0
          %v1514 = vsel %vm1512, 1, 0
          %v1515 = vcvt.s32.f32 %v1513
          %v1516 = vcvt.s32.f32 %v1514
          %v1517 = vadd.s32 %v1506, 1
          %v1518 = vadd.s32 %v1507, 1
          %vm1519 = vcmp.eq.s32.totalorder %v1517, %v1509
          %vm1520 = vcmp.eq.s32.totalorder %v1518, %v1509
          %v1521 = vsel %vm1519, 1, 0
          %v1522 = vsel %vm1520, 1, 0
          %v1523 = vcvt.s32.f32 %v1521
          %v1524 = vcvt.s32.f32 %v1522
          %vm1525 = vcmask 130048
          %v1527 = vsel %vm1525, %v1515, 0
          %v1530 = vsel %vm1525, %v1516, 0
          %1532 = vmatpush.msra.mxu0 0.0
          %1533 = vmatpush.msra.mxu0 0.0
          %1534 = vmatpush.msra.mxu0 0.0
          %1535 = vmatpush.msra.mxu0 0.0
          %1536 = vmatpush.msra.mxu0 0.0
          %1537 = vmatpush.msra.mxu0 0.0
          %1538 = vmatpush.msra.mxu0 0.0
          %1539 = vmatpush.msra.mxu0 0.0
          %1540 = vmatpush.msra.mxu0 0.0
          %1541 = vmatpush.msra.mxu0 0.0
          %1542 = vmatpush.msra.mxu0 0.0
          %1543 = vmatpush.msra.mxu0 0.0
          %1544 = vmatpush.msra.mxu0 0.0
          %1545 = vmatpush.msra.mxu0 0.0
          %1546 = vmatpush.msra.mxu0 %v1504
          %1547 = vmatpush.msra.mxu0 %v1503
          %1548 = vmatmul.f32.gmra.mxu0 %v1527
          %v1549 = vpop.f32.mrf.mxu0
          %v1550 = vadd.f32 0.0, %v1549
          %1551 = vmatmul.f32.gmra.mxu0 %v1530
          %v1552 = vpop.f32.mrf.mxu0
          %v1553 = vadd.f32 0.0, %v1552
          %1554 = vdwg.mxu0
          %v1556 = vsel %vm1525, %v1523, 0
          %v1559 = vsel %vm1525, %v1524, 0
          %1561 = vmatpush.msra.mxu0 0.0
          %1562 = vmatpush.msra.mxu0 0.0
          %1563 = vmatpush.msra.mxu0 0.0
          %1564 = vmatpush.msra.mxu0 0.0
          %1565 = vmatpush.msra.mxu0 0.0
          %1566 = vmatpush.msra.mxu0 0.0
          %1567 = vmatpush.msra.mxu0 0.0
          %1568 = vmatpush.msra.mxu0 0.0
          %1569 = vmatpush.msra.mxu0 0.0
          %1570 = vmatpush.msra.mxu0 0.0
          %1571 = vmatpush.msra.mxu0 0.0
          %1572 = vmatpush.msra.mxu0 0.0
          %1573 = vmatpush.msra.mxu0 0.0
          %1574 = vmatpush.msra.mxu0 0.0
          %1575 = vmatpush.msra.mxu0 %v1504
          %1576 = vmatpush.msra.mxu0 %v1503
          %1577 = vmatmul.f32.gmra.mxu0 %v1556
          %v1578 = vpop.f32.mrf.mxu0
          %v1579 = vadd.f32 0.0, %v1578
          %1580 = vmatmul.f32.gmra.mxu0 %v1559
          %v1581 = vpop.f32.mrf.mxu0
          %v1582 = vadd.f32 0.0, %v1581
          %1583 = vdwg.mxu0
          %vm1584 = vcmp.eq.s32.totalorder %v1506, 0
          %vm1585 = vcmp.eq.s32.totalorder %v1507, 0
          %v1586 = vsel %vm1584, -inf, %v1550
          %v1587 = vsel %vm1585, -inf, %v1553
          %vm1588 = vcmp.eq.s32.totalorder %v1506, 15
          %vm1589 = vcmp.eq.s32.totalorder %v1507, 15
          %v1590 = vsel %vm1588, -inf, %v1579
          %v1591 = vsel %vm1589, -inf, %v1582
          %v1592 = vmax.f32 %v1586, %v1503
          %v1593 = vmax.f32 %v1587, %v1504
          %v1594 = vmax.f32 %v1592, %v1590
          %v1595 = vmax.f32 %v1593, %v1591
          %v1596 = vadd.f32 %v1550, %v1503
          %v1597 = vadd.f32 %v1553, %v1504
          %v1598 = vadd.f32 %v1596, %v1579
          %v1599 = vadd.f32 %v1597, %v1582
          %v1600 = vmul.f32 %v1598, 0.33333334
          %v1601 = vmul.f32 %v1599, 0.33333334
          %v1602 = vadd.f32 %v1594, %v1600
          %v1603 = vadd.f32 %v1595, %v1601
          %v1604 = vadd.f32 %v1602, %v1603
          %v1605 = vrot.slane %v1604, 4
          %v1606 = vadd.f32 %v1604, %v1605
          %v1607 = vrot.slane %v1606, 2
          %v1608 = vadd.f32 %v1606, %v1607
          %v1609 = vrot.slane %v1608, 1
          %v1610 = vadd.f32 %v1608, %v1609
          %v1611 = vmul.f32 %v1610, 0.00390625
          %v1612 = vld [vmem:[%s3] sm:$0xff]
          %v1613 = vld [vmem:[%s3 + $0x8] sm:$0xff]
          %v1614 = vld [vmem:[%s3 + $0x10] sm:$0xff]
          %v1615 = vld [vmem:[%s3 + $0x18] sm:$0xff]
          %v1616 = vld [vmem:[%s3 + $0x20] sm:$0xff]
          %v1617 = vld [vmem:[%s3 + $0x28] sm:$0xff]
          %v1618 = vld [vmem:[%s3 + $0x30] sm:$0xff]
          %v1619 = vld [vmem:[%s3 + $0x38] sm:$0xff]
          %v1620 = vld [vmem:[%s3 + $0x40] sm:$0xff]
          %v1621 = vld [vmem:[%s3 + $0x48] sm:$0xff]
          %v1622 = vld [vmem:[%s3 + $0x50] sm:$0xff]
          %v1623 = vld [vmem:[%s3 + $0x58] sm:$0xff]
          %v1624 = vld [vmem:[%s3 + $0x60] sm:$0xff]
          %v1625 = vld [vmem:[%s3 + $0x68] sm:$0xff]
          %v1626 = vld [vmem:[%s3 + $0x70] sm:$0xff]
          %v1627 = vld [vmem:[%s3 + $0x78] sm:$0xff]
          %v1628 = vld [vmem:[%s4] sm:$0x1]
          %1629 = vmatpush.msra.mxu0 %v1627
          %1630 = vmatpush.msra.mxu0 %v1626
          %1631 = vmatpush.msra.mxu0 %v1625
          %1632 = vmatpush.msra.mxu0 %v1624
          %1633 = vmatpush.msra.mxu0 %v1623
          %1634 = vmatpush.msra.mxu0 %v1622
          %1635 = vmatpush.msra.mxu0 %v1621
          %1636 = vmatpush.msra.mxu0 %v1620
          %1637 = vmatpush.msra.mxu0 %v1619
          %1638 = vmatpush.msra.mxu0 %v1618
          %1639 = vmatpush.msra.mxu0 %v1617
          %1640 = vmatpush.msra.mxu0 %v1616
          %1641 = vmatpush.msra.mxu0 %v1615
          %1642 = vmatpush.msra.mxu0 %v1614
          %1643 = vmatpush.msra.mxu0 %v1613
          %1644 = vmatpush.msra.mxu0 %v1612
          %1645 = vmatmul.f32.gmra.mxu0 %v1611
          %v1646 = vpop.f32.mrf.mxu0
          %v1647 = vadd.f32 %v1628, %v1646
          %1648 = vdwg.mxu0
          %1649 = vst [vmem:[%s242] sm:$0x1] %v1647
        $region48: #{sed_cnn_forward.1} parent=39 // pred_fallthru
          _
        %s1650 = sand.u32 %s151, 1
        %s1651 = scalar_lea.sflag [#allocation4], %s1650
        %s1652 = sand.u32 %s151, 1
        %s1653 = scalar_lea.vmem [#allocation3], %s1652
        // Predicated region
        $region49: #{sed_cnn_forward.1} parent=39 // pred_check
          %p1654 = pneg %p161
        $region50: #{sed_cnn_forward.1} parent=39 // pred_check_branch
          %1656 = sbr.rel (%p1654) target = $region52
        $region51: #{sed_cnn_forward.1} parent=39 // pred_region
          %1658 = vsyncadd %s1651, 0
          %s1659 = scalar_lea.hbm %s5, %s23
          %s1661 = sshll.u32 %s1653, 4
          %s1662 = int_to_ptr.vmem [resolvable:$true] %s1661
          %s1663 = sshll.u32 %s1659, 4
          %s1664 = int_to_ptr.hbm [resolvable:$true] %s1663
          %1666 = dma.vmem_to_hbm [thread:$0]  %s1662, 16, %s1664, %s1651
        $region52: #{sed_cnn_forward.1} parent=39 // pred_fallthru
          _
      $region40: #{sed_cnn_forward.1} parent=5 // pred_fallthru
        _
      %p1667 = scmp.le.s32.totalorder 2, %s14
      // Predicated region
      $region53: #{sed_cnn_forward.1} parent=5 // pred_check
        %p1668 = pneg %p1667
      $region54: #{sed_cnn_forward.1} parent=5 // pred_check_branch
        %1670 = sbr.rel (%p1668) target = $region56
      $region55: #{sed_cnn_forward.1} parent=5 // pred_region
        %s1671 = ssub.s32 %s14, 2
        // Predicated region
        $region57: #{sed_cnn_forward.1} parent=55 // pred_check
          %p1672 = pneg %p167
        $region58: #{sed_cnn_forward.1} parent=55 // pred_check_branch
          %1674 = sbr.rel (%p1672) target = $region60
        $region59: #{sed_cnn_forward.1} parent=55 // pred_region
          %s1675 = sand.u32 %s152, 1
          %s1676 = scalar_lea.sflag [#allocation4], %s1675
          %s1677 = sand.u32 %s152, 1
          %s1678 = scalar_lea.vmem [#allocation3], %s1677
          %1680 = dma.done %s1676, 16
        $region60: #{sed_cnn_forward.1} parent=55 // pred_fallthru
          _
      $region56: #{sed_cnn_forward.1} parent=5 // pred_fallthru
        _
    $region6: #{sed_cnn_forward.1} parent=1 // loop_footer
      %s18 = sadd.s32 1, %s14
    $region7: #{sed_cnn_forward.1} parent=1 // loop_footer_branch
      %13 = sbr.rel target = $region3
    $region8: #{sed_cnn_forward.1} parent=1 // loop_exit
      _
    %1681 = vsyncpa [#allocation4], 1
    %s1682 = scalar_lea.sflag [#allocation4], 1
    %1683 = vsyncpa %s1682, 1

</llo_original>
